<compile_context>
chip_gen: v7x
topology: tpu7x:2x2x1
jax: 0.10.0
libtpu: 0.0.40
codegen_flags: <defaults>
</compile_context>

<pallas_src>
import functools

import jax
import jax.numpy as jnp
from jax.experimental import pallas as pl
from jax.experimental.pallas import tpu as pltpu


def _my_attention_kernel(xf_ref, yf_ref, resf_ref, wqt_ref, wkvt_ref,
                         gamma_ref, beta_ref, o_ref, *,
                         heads, dim_head, scale, eps):
    # Blocks (per batch element):
    #   xf_ref   : (1, n_x, dim)            flattened x
    #   yf_ref   : (1, n_y, dim)            flattened y
    #   resf_ref : (1, n_x, heads*dim_head) residual, head-major columns
    #   wqt_ref  : (dim, heads*dim_head)    Wq^T
    #   wkvt_ref : (dim, 2*heads*dim_head)  [Wk^T | Wv^T]
    #   gamma/beta_ref : (1, heads*dim_head) LN affine, tiled per head
    #   o_ref    : (1, n_x, heads*dim_head)
    xf = xf_ref[0].astype(jnp.float32)          # (n_x, dim)
    yf = yf_ref[0].astype(jnp.float32)          # (n_y, dim)
    res = resf_ref[0].astype(jnp.float32)       # (n_x, heads*dim_head)

    hd = heads * dim_head

    # Lane-dense projections: N=hd (Q) and N=2*hd (fused K|V).
    q_all = jnp.dot(xf, wqt_ref[...], preferred_element_type=jnp.float32)   # (n_x, hd)
    kv_all = jnp.dot(yf, wkvt_ref[...], preferred_element_type=jnp.float32)  # (n_y, 2*hd)
    k_all = kv_all[:, :hd]
    v_all = kv_all[:, hd:]

    outs = []
    for h in range(heads):                       # static unrolled head loop
        sl = slice(h * dim_head, (h + 1) * dim_head)
        q_h = q_all[:, sl]                       # (n_x, d)
        k_h = k_all[:, sl]                       # (n_y, d)
        v_h = v_all[:, sl]                       # (n_y, d)

        # dots = q_h @ k_h^T (contract last dims directly, no explicit transpose)
        dots = jax.lax.dot_general(
            q_h, k_h, dimension_numbers=(((1,), (1,)), ((), ())),
            preferred_element_type=jnp.float32) * scale          # (n_x, n_y)

        m = jnp.max(dots, axis=-1, keepdims=True)
        e = jnp.exp(dots - m)
        attn = e / jnp.sum(e, axis=-1, keepdims=True)

        o_h = jnp.dot(attn, v_h, preferred_element_type=jnp.float32)  # (n_x, d)

        s = o_h + res[:, sl]
        mu = jnp.mean(s, axis=-1, keepdims=True)
        var = jnp.mean((s - mu) ** 2, axis=-1, keepdims=True)
        outs.append((s - mu) * jax.lax.rsqrt(var + eps))

    # Single lane-dense (n_x, heads*dim_head) store; LN affine applied on the
    # stacked slab with gamma/beta pre-tiled per head in the wrapper.
    norm = jnp.concatenate(outs, axis=-1)                         # (n_x, hd)
    o_ref[0] = (norm * gamma_ref[...] + beta_ref[...]).astype(o_ref.dtype)


@functools.partial(jax.jit, static_argnames=("heads", "dim_head", "eps"))
def my_attention(x, y, wq, wk, wv, gamma, beta, *, heads, dim_head, eps=1e-5):
    """x: (B, n_x, d, H), y: (B, n_y, d, H). Returns (B, heads, n_x, dim_head)."""
    B, n_x, d_x, h_x = x.shape
    _, n_y, d_y, h_y = y.shape
    assert d_x == dim_head and d_y == dim_head and h_x == heads and h_y == heads
    dim = d_x * h_x
    hd = heads * dim_head
    scale = float(dim_head) ** (-0.5)

    # Wrapper-side layout plumbing (lane-dense kernel operands).
    xf = x.reshape(B, n_x, dim).astype(jnp.float32)
    yf = y.reshape(B, n_y, d_y * h_y).astype(jnp.float32)
    # residual = x.permute(0,3,1,2) presented as (B, n_x, heads*dim_head) with
    # head-major columns (same column order as the Q projection output).
    resf = jnp.transpose(x, (0, 1, 3, 2)).reshape(B, n_x, hd).astype(jnp.float32)

    wqt = wq.T.astype(jnp.float32)                                    # (dim, hd)
    wkvt = jnp.concatenate([wk.T, wv.T], axis=1).astype(jnp.float32)  # (dim, 2*hd)
    g = jnp.tile(gamma.astype(jnp.float32), heads).reshape(1, hd)
    bb = jnp.tile(beta.astype(jnp.float32), heads).reshape(1, hd)

    kernel = functools.partial(
        _my_attention_kernel,
        heads=heads, dim_head=dim_head, scale=scale, eps=eps)

    out = pl.pallas_call(
        kernel,
        out_shape=jax.ShapeDtypeStruct((B, n_x, hd), jnp.float32),
        grid_spec=pltpu.PrefetchScalarGridSpec(
            num_scalar_prefetch=0,
            grid=(B,),
            in_specs=[
                pl.BlockSpec((1, n_x, dim), lambda i: (i, 0, 0)),
                pl.BlockSpec((1, n_y, dim), lambda i: (i, 0, 0)),
                pl.BlockSpec((1, n_x, hd), lambda i: (i, 0, 0)),
                pl.BlockSpec((dim, hd), lambda i: (0, 0)),
                pl.BlockSpec((dim, 2 * hd), lambda i: (0, 0)),
                pl.BlockSpec((1, hd), lambda i: (0, 0)),
                pl.BlockSpec((1, hd), lambda i: (0, 0)),
            ],
            out_specs=pl.BlockSpec((1, n_x, hd), lambda i: (i, 0, 0)),
        ),
        compiler_params=pltpu.CompilerParams(
            dimension_semantics=("parallel",)),
    )(xf, yf, resf, wqt, wkvt, g, bb)

    # (B, n_x, heads, d) -> (B, heads, n_x, d)  (matches the PyTorch output)
    return out.reshape(B, n_x, heads, dim_head).transpose(0, 2, 1, 3)


def my_attention_reference(x, y, wq, wk, wv, gamma, beta, *, heads, dim_head, eps=1e-5):
    """Pure-JAX mirror of the PyTorch forward."""
    B, n_x, d_x, h_x = x.shape
    _, n_y, d_y, h_y = y.shape
    scale = float(dim_head) ** (-0.5)
    residual = jnp.transpose(x, (0, 3, 1, 2))                     # (B, H, n_x, d)
    xf = x.reshape(B, n_x, -1)
    yf = y.reshape(B, n_y, -1)
    q = (xf @ wq.T).reshape(B, -1, heads, d_x).transpose(0, 2, 1, 3)
    k = (yf @ wk.T).reshape(B, -1, heads, d_y).transpose(0, 2, 1, 3)
    v = (yf @ wv.T).reshape(B, -1, heads, d_y).transpose(0, 2, 1, 3)
    dots = jnp.einsum('bhid,bhjd->bhij', q, k) * scale
    attn = jax.nn.softmax(dots, axis=-1)
    out = jnp.einsum('bhij,bhjd->bhid', attn, v)
    s = out + residual
    mu = jnp.mean(s, axis=-1, keepdims=True)
    var = jnp.mean((s - mu) ** 2, axis=-1, keepdims=True)
    return (s - mu) * jax.lax.rsqrt(var + eps) * gamma + beta


if __name__ == "__main__":
    batch = 2
    heads = 4
    dim_head = 16
    n_x = 16
    n_y = 16
    dim = dim_head * heads          # 64 = Linear input dim

    key = jax.random.PRNGKey(0)
    kx, ky, kq, kk, kv, kg, kb = jax.random.split(key, 7)

    # x, y: (B, n, d, H) as the PyTorch forward implies
    x = jax.random.normal(kx, (batch, n_x, dim_head, heads), dtype=jnp.float32)
    y = jax.random.normal(ky, (batch, n_y, dim_head, heads), dtype=jnp.float32)

    # nn.Linear(dim, dim_head*heads, bias=False): weight is (out, in)
    wq = 0.1 * jax.random.normal(kq, (heads * dim_head, dim), dtype=jnp.float32)
    wk = 0.1 * jax.random.normal(kk, (heads * dim_head, dim), dtype=jnp.float32)
    wv = 0.1 * jax.random.normal(kv, (heads * dim_head, dim), dtype=jnp.float32)
    # nn.LayerNorm(dim_head) affine params
    gamma = 1.0 + 0.1 * jax.random.normal(kg, (dim_head,), dtype=jnp.float32)
    beta = 0.1 * jax.random.normal(kb, (dim_head,), dtype=jnp.float32)

    out = jax.block_until_ready(
        my_attention(x, y, wq, wk, wv, gamma, beta, heads=heads, dim_head=dim_head))
    ref = jax.block_until_ready(
        my_attention_reference(x, y, wq, wk, wv, gamma, beta, heads=heads, dim_head=dim_head))

    assert out.shape == (batch, heads, n_x, dim_head), out.shape
    assert jnp.allclose(out, ref, atol=1e-4, rtol=1e-4), float(jnp.max(jnp.abs(out - ref)))
    print("KERNEL_OK")
</pallas_src>

<mosaic_0001>
module attributes {stable_mosaic.version = 11 : i64} {
  func.func @_my_attention_kernel(%arg0: i32, %arg1: memref<1x16x64xf32, #tpu.memory_space<vmem>>, %arg2: memref<1x16x64xf32, #tpu.memory_space<vmem>>, %arg3: memref<1x16x64xf32, #tpu.memory_space<vmem>>, %arg4: memref<64x64xf32, #tpu.memory_space<vmem>>, %arg5: memref<64x128xf32, #tpu.memory_space<vmem>>, %arg6: memref<1x64xf32, #tpu.memory_space<vmem>>, %arg7: memref<1x64xf32, #tpu.memory_space<vmem>>, %arg8: memref<1x16x64xf32, #tpu.memory_space<vmem>>) attributes {dimension_semantics = [#tpu.dimension_semantics<parallel>], iteration_bounds = array<i64: 2>, scalar_prefetch = 0 : i64, scratch_operands = 0 : i64, tpu.core_type = #tpu.core_type<tc>, window_params = [{transform_indices = @transform_0, window_bounds = array<i64: 1, 16, 64>}, {transform_indices = @transform_1, window_bounds = array<i64: 1, 16, 64>}, {transform_indices = @transform_2, window_bounds = array<i64: 1, 16, 64>}, {pipeline_mode = #tpu.pipeline_mode<synchronous>, transform_indices = @transform_3, window_bounds = array<i64: 64, 64>}, {pipeline_mode = #tpu.pipeline_mode<synchronous>, transform_indices = @transform_4, window_bounds = array<i64: 64, 128>}, {pipeline_mode = #tpu.pipeline_mode<synchronous>, transform_indices = @transform_5, window_bounds = array<i64: 1, 64>}, {pipeline_mode = #tpu.pipeline_mode<synchronous>, transform_indices = @transform_6, window_bounds = array<i64: 1, 64>}, {transform_indices = @transform_7, window_bounds = array<i64: 1, 16, 64>}]} {
    %c0 = arith.constant 0 : index
    %c0_0 = arith.constant 0 : index
    %c0_1 = arith.constant 0 : index
    %0 = vector.load %arg1[%c0, %c0_0, %c0_1] : memref<1x16x64xf32, #tpu.memory_space<vmem>>, vector<1x16x64xf32>
    %1 = vector.shape_cast %0 : vector<1x16x64xf32> to vector<16x64xf32>
    %c0_2 = arith.constant 0 : index
    %c0_3 = arith.constant 0 : index
    %c0_4 = arith.constant 0 : index
    %2 = vector.load %arg2[%c0_2, %c0_3, %c0_4] : memref<1x16x64xf32, #tpu.memory_space<vmem>>, vector<1x16x64xf32>
    %3 = vector.shape_cast %2 : vector<1x16x64xf32> to vector<16x64xf32>
    %c0_5 = arith.constant 0 : index
    %c0_6 = arith.constant 0 : index
    %c0_7 = arith.constant 0 : index
    %4 = vector.load %arg3[%c0_5, %c0_6, %c0_7] : memref<1x16x64xf32, #tpu.memory_space<vmem>>, vector<1x16x64xf32>
    %5 = vector.shape_cast %4 : vector<1x16x64xf32> to vector<16x64xf32>
    %c0_8 = arith.constant 0 : index
    %c0_9 = arith.constant 0 : index
    %6 = vector.load %arg4[%c0_8, %c0_9] : memref<64x64xf32, #tpu.memory_space<vmem>>, vector<64x64xf32>
    %cst = arith.constant dense<0.000000e+00> : vector<16x64xf32>
    %7 = tpu.matmul %1, %6, %cst {dimension_numbers = #tpu.dot_dimension_numbers<[1], [0], [0], [1], [0, 0, 1, 1], [], []>} : vector<16x64xf32>, vector<64x64xf32>, vector<16x64xf32> -> vector<16x64xf32>
    %c0_10 = arith.constant 0 : index
    %c0_11 = arith.constant 0 : index
    %8 = vector.load %arg5[%c0_10, %c0_11] : memref<64x128xf32, #tpu.memory_space<vmem>>, vector<64x128xf32>
    %cst_12 = arith.constant dense<0.000000e+00> : vector<16x128xf32>
    %9 = tpu.matmul %3, %8, %cst_12 {dimension_numbers = #tpu.dot_dimension_numbers<[1], [0], [0], [1], [0, 0, 1, 1], [], []>} : vector<16x64xf32>, vector<64x128xf32>, vector<16x128xf32> -> vector<16x128xf32>
    %10 = vector.extract_strided_slice %9 {offsets = [0, 0], sizes = [16, 64], strides = [1, 1]} : vector<16x128xf32> to vector<16x64xf32>
    %11 = vector.extract_strided_slice %9 {offsets = [0, 64], sizes = [16, 64], strides = [1, 1]} : vector<16x128xf32> to vector<16x64xf32>
    %12 = vector.extract_strided_slice %7 {offsets = [0, 0], sizes = [16, 16], strides = [1, 1]} : vector<16x64xf32> to vector<16x16xf32>
    %13 = vector.extract_strided_slice %10 {offsets = [0, 0], sizes = [16, 16], strides = [1, 1]} : vector<16x64xf32> to vector<16x16xf32>
    %14 = vector.extract_strided_slice %11 {offsets = [0, 0], sizes = [16, 16], strides = [1, 1]} : vector<16x64xf32> to vector<16x16xf32>
    %cst_13 = arith.constant dense<0.000000e+00> : vector<16x16xf32>
    %15 = tpu.matmul %12, %13, %cst_13 {dimension_numbers = #tpu.dot_dimension_numbers<[1], [1], [0], [0], [0, 0, 1, 0], [], []>} : vector<16x16xf32>, vector<16x16xf32>, vector<16x16xf32> -> vector<16x16xf32>
    %cst_14 = arith.constant 2.500000e-01 : f32
    %16 = vector.broadcast %cst_14 : f32 to vector<16x16xf32>
    %17 = arith.mulf %15, %16 : vector<16x16xf32>
    %cst_15 = arith.constant dense<0xFF800000> : vector<16xf32>
    %18 = vector.multi_reduction <maximumf>, %17, %cst_15 [1] : vector<16x16xf32> to vector<16xf32>
    %19 = vector.shape_cast %18 : vector<16xf32> to vector<16x1xf32>
    %20 = vector.broadcast %19 : vector<16x1xf32> to vector<16x16xf32>
    %21 = arith.subf %17, %20 : vector<16x16xf32>
    %22 = math.exp %21 : vector<16x16xf32>
    %cst_16 = arith.constant dense<0.000000e+00> : vector<16xf32>
    %23 = vector.multi_reduction <add>, %22, %cst_16 [1] : vector<16x16xf32> to vector<16xf32>
    %24 = vector.shape_cast %23 : vector<16xf32> to vector<16x1xf32>
    %25 = vector.broadcast %24 : vector<16x1xf32> to vector<16x16xf32>
    %26 = arith.divf %22, %25 : vector<16x16xf32>
    %cst_17 = arith.constant dense<0.000000e+00> : vector<16x16xf32>
    %27 = tpu.matmul %26, %14, %cst_17 {dimension_numbers = #tpu.dot_dimension_numbers<[1], [0], [0], [1], [0, 0, 1, 1], [], []>} : vector<16x16xf32>, vector<16x16xf32>, vector<16x16xf32> -> vector<16x16xf32>
    %28 = vector.extract_strided_slice %5 {offsets = [0, 0], sizes = [16, 16], strides = [1, 1]} : vector<16x64xf32> to vector<16x16xf32>
    %29 = arith.addf %27, %28 : vector<16x16xf32>
    %cst_18 = arith.constant dense<0.000000e+00> : vector<16xf32>
    %30 = vector.multi_reduction <add>, %29, %cst_18 [1] : vector<16x16xf32> to vector<16xf32>
    %31 = vector.shape_cast %30 : vector<16xf32> to vector<16x1xf32>
    %cst_19 = arith.constant 1.600000e+01 : f32
    %32 = vector.broadcast %cst_19 : f32 to vector<16x1xf32>
    %33 = arith.divf %31, %32 : vector<16x1xf32>
    %34 = vector.broadcast %33 : vector<16x1xf32> to vector<16x16xf32>
    %35 = arith.subf %29, %34 : vector<16x16xf32>
    %36 = arith.mulf %35, %35 : vector<16x16xf32>
    %cst_20 = arith.constant dense<0.000000e+00> : vector<16xf32>
    %37 = vector.multi_reduction <add>, %36, %cst_20 [1] : vector<16x16xf32> to vector<16xf32>
    %38 = vector.shape_cast %37 : vector<16xf32> to vector<16x1xf32>
    %cst_21 = arith.constant 1.600000e+01 : f32
    %39 = vector.broadcast %cst_21 : f32 to vector<16x1xf32>
    %40 = arith.divf %38, %39 : vector<16x1xf32>
    %41 = vector.broadcast %33 : vector<16x1xf32> to vector<16x16xf32>
    %42 = arith.subf %29, %41 : vector<16x16xf32>
    %cst_22 = arith.constant 9.99999974E-6 : f32
    %43 = vector.broadcast %cst_22 : f32 to vector<16x1xf32>
    %44 = arith.addf %40, %43 : vector<16x1xf32>
    %45 = math.rsqrt %44 : vector<16x1xf32>
    %46 = vector.broadcast %45 : vector<16x1xf32> to vector<16x16xf32>
    %47 = arith.mulf %42, %46 : vector<16x16xf32>
    %48 = vector.extract_strided_slice %7 {offsets = [0, 16], sizes = [16, 16], strides = [1, 1]} : vector<16x64xf32> to vector<16x16xf32>
    %49 = vector.extract_strided_slice %10 {offsets = [0, 16], sizes = [16, 16], strides = [1, 1]} : vector<16x64xf32> to vector<16x16xf32>
    %50 = vector.extract_strided_slice %11 {offsets = [0, 16], sizes = [16, 16], strides = [1, 1]} : vector<16x64xf32> to vector<16x16xf32>
    %cst_23 = arith.constant dense<0.000000e+00> : vector<16x16xf32>
    %51 = tpu.matmul %48, %49, %cst_23 {dimension_numbers = #tpu.dot_dimension_numbers<[1], [1], [0], [0], [0, 0, 1, 0], [], []>} : vector<16x16xf32>, vector<16x16xf32>, vector<16x16xf32> -> vector<16x16xf32>
    %cst_24 = arith.constant 2.500000e-01 : f32
    %52 = vector.broadcast %cst_24 : f32 to vector<16x16xf32>
    %53 = arith.mulf %51, %52 : vector<16x16xf32>
    %cst_25 = arith.constant dense<0xFF800000> : vector<16xf32>
    %54 = vector.multi_reduction <maximumf>, %53, %cst_25 [1] : vector<16x16xf32> to vector<16xf32>
    %55 = vector.shape_cast %54 : vector<16xf32> to vector<16x1xf32>
    %56 = vector.broadcast %55 : vector<16x1xf32> to vector<16x16xf32>
    %57 = arith.subf %53, %56 : vector<16x16xf32>
    %58 = math.exp %57 : vector<16x16xf32>
    %cst_26 = arith.constant dense<0.000000e+00> : vector<16xf32>
    %59 = vector.multi_reduction <add>, %58, %cst_26 [1] : vector<16x16xf32> to vector<16xf32>
    %60 = vector.shape_cast %59 : vector<16xf32> to vector<16x1xf32>
    %61 = vector.broadcast %60 : vector<16x1xf32> to vector<16x16xf32>
    %62 = arith.divf %58, %61 : vector<16x16xf32>
    %cst_27 = arith.constant dense<0.000000e+00> : vector<16x16xf32>
    %63 = tpu.matmul %62, %50, %cst_27 {dimension_numbers = #tpu.dot_dimension_numbers<[1], [0], [0], [1], [0, 0, 1, 1], [], []>} : vector<16x16xf32>, vector<16x16xf32>, vector<16x16xf32> -> vector<16x16xf32>
    %64 = vector.extract_strided_slice %5 {offsets = [0, 16], sizes = [16, 16], strides = [1, 1]} : vector<16x64xf32> to vector<16x16xf32>
    %65 = arith.addf %63, %64 : vector<16x16xf32>
    %cst_28 = arith.constant dense<0.000000e+00> : vector<16xf32>
    %66 = vector.multi_reduction <add>, %65, %cst_28 [1] : vector<16x16xf32> to vector<16xf32>
    %67 = vector.shape_cast %66 : vector<16xf32> to vector<16x1xf32>
    %cst_29 = arith.constant 1.600000e+01 : f32
    %68 = vector.broadcast %cst_29 : f32 to vector<16x1xf32>
    %69 = arith.divf %67, %68 : vector<16x1xf32>
    %70 = vector.broadcast %69 : vector<16x1xf32> to vector<16x16xf32>
    %71 = arith.subf %65, %70 : vector<16x16xf32>
    %72 = arith.mulf %71, %71 : vector<16x16xf32>
    %cst_30 = arith.constant dense<0.000000e+00> : vector<16xf32>
    %73 = vector.multi_reduction <add>, %72, %cst_30 [1] : vector<16x16xf32> to vector<16xf32>
    %74 = vector.shape_cast %73 : vector<16xf32> to vector<16x1xf32>
    %cst_31 = arith.constant 1.600000e+01 : f32
    %75 = vector.broadcast %cst_31 : f32 to vector<16x1xf32>
    %76 = arith.divf %74, %75 : vector<16x1xf32>
    %77 = vector.broadcast %69 : vector<16x1xf32> to vector<16x16xf32>
    %78 = arith.subf %65, %77 : vector<16x16xf32>
    %cst_32 = arith.constant 9.99999974E-6 : f32
    %79 = vector.broadcast %cst_32 : f32 to vector<16x1xf32>
    %80 = arith.addf %76, %79 : vector<16x1xf32>
    %81 = math.rsqrt %80 : vector<16x1xf32>
    %82 = vector.broadcast %81 : vector<16x1xf32> to vector<16x16xf32>
    %83 = arith.mulf %78, %82 : vector<16x16xf32>
    %84 = vector.extract_strided_slice %7 {offsets = [0, 32], sizes = [16, 16], strides = [1, 1]} : vector<16x64xf32> to vector<16x16xf32>
    %85 = vector.extract_strided_slice %10 {offsets = [0, 32], sizes = [16, 16], strides = [1, 1]} : vector<16x64xf32> to vector<16x16xf32>
    %86 = vector.extract_strided_slice %11 {offsets = [0, 32], sizes = [16, 16], strides = [1, 1]} : vector<16x64xf32> to vector<16x16xf32>
    %cst_33 = arith.constant dense<0.000000e+00> : vector<16x16xf32>
    %87 = tpu.matmul %84, %85, %cst_33 {dimension_numbers = #tpu.dot_dimension_numbers<[1], [1], [0], [0], [0, 0, 1, 0], [], []>} : vector<16x16xf32>, vector<16x16xf32>, vector<16x16xf32> -> vector<16x16xf32>
    %cst_34 = arith.constant 2.500000e-01 : f32
    %88 = vector.broadcast %cst_34 : f32 to vector<16x16xf32>
    %89 = arith.mulf %87, %88 : vector<16x16xf32>
    %cst_35 = arith.constant dense<0xFF800000> : vector<16xf32>
    %90 = vector.multi_reduction <maximumf>, %89, %cst_35 [1] : vector<16x16xf32> to vector<16xf32>
    %91 = vector.shape_cast %90 : vector<16xf32> to vector<16x1xf32>
    %92 = vector.broadcast %91 : vector<16x1xf32> to vector<16x16xf32>
    %93 = arith.subf %89, %92 : vector<16x16xf32>
    %94 = math.exp %93 : vector<16x16xf32>
    %cst_36 = arith.constant dense<0.000000e+00> : vector<16xf32>
    %95 = vector.multi_reduction <add>, %94, %cst_36 [1] : vector<16x16xf32> to vector<16xf32>
    %96 = vector.shape_cast %95 : vector<16xf32> to vector<16x1xf32>
    %97 = vector.broadcast %96 : vector<16x1xf32> to vector<16x16xf32>
    %98 = arith.divf %94, %97 : vector<16x16xf32>
    %cst_37 = arith.constant dense<0.000000e+00> : vector<16x16xf32>
    %99 = tpu.matmul %98, %86, %cst_37 {dimension_numbers = #tpu.dot_dimension_numbers<[1], [0], [0], [1], [0, 0, 1, 1], [], []>} : vector<16x16xf32>, vector<16x16xf32>, vector<16x16xf32> -> vector<16x16xf32>
    %100 = vector.extract_strided_slice %5 {offsets = [0, 32], sizes = [16, 16], strides = [1, 1]} : vector<16x64xf32> to vector<16x16xf32>
    %101 = arith.addf %99, %100 : vector<16x16xf32>
    %cst_38 = arith.constant dense<0.000000e+00> : vector<16xf32>
    %102 = vector.multi_reduction <add>, %101, %cst_38 [1] : vector<16x16xf32> to vector<16xf32>
    %103 = vector.shape_cast %102 : vector<16xf32> to vector<16x1xf32>
    %cst_39 = arith.constant 1.600000e+01 : f32
    %104 = vector.broadcast %cst_39 : f32 to vector<16x1xf32>
    %105 = arith.divf %103, %104 : vector<16x1xf32>
    %106 = vector.broadcast %105 : vector<16x1xf32> to vector<16x16xf32>
    %107 = arith.subf %101, %106 : vector<16x16xf32>
    %108 = arith.mulf %107, %107 : vector<16x16xf32>
    %cst_40 = arith.constant dense<0.000000e+00> : vector<16xf32>
    %109 = vector.multi_reduction <add>, %108, %cst_40 [1] : vector<16x16xf32> to vector<16xf32>
    %110 = vector.shape_cast %109 : vector<16xf32> to vector<16x1xf32>
    %cst_41 = arith.constant 1.600000e+01 : f32
    %111 = vector.broadcast %cst_41 : f32 to vector<16x1xf32>
    %112 = arith.divf %110, %111 : vector<16x1xf32>
    %113 = vector.broadcast %105 : vector<16x1xf32> to vector<16x16xf32>
    %114 = arith.subf %101, %113 : vector<16x16xf32>
    %cst_42 = arith.constant 9.99999974E-6 : f32
    %115 = vector.broadcast %cst_42 : f32 to vector<16x1xf32>
    %116 = arith.addf %112, %115 : vector<16x1xf32>
    %117 = math.rsqrt %116 : vector<16x1xf32>
    %118 = vector.broadcast %117 : vector<16x1xf32> to vector<16x16xf32>
    %119 = arith.mulf %114, %118 : vector<16x16xf32>
    %120 = vector.extract_strided_slice %7 {offsets = [0, 48], sizes = [16, 16], strides = [1, 1]} : vector<16x64xf32> to vector<16x16xf32>
    %121 = vector.extract_strided_slice %10 {offsets = [0, 48], sizes = [16, 16], strides = [1, 1]} : vector<16x64xf32> to vector<16x16xf32>
    %122 = vector.extract_strided_slice %11 {offsets = [0, 48], sizes = [16, 16], strides = [1, 1]} : vector<16x64xf32> to vector<16x16xf32>
    %cst_43 = arith.constant dense<0.000000e+00> : vector<16x16xf32>
    %123 = tpu.matmul %120, %121, %cst_43 {dimension_numbers = #tpu.dot_dimension_numbers<[1], [1], [0], [0], [0, 0, 1, 0], [], []>} : vector<16x16xf32>, vector<16x16xf32>, vector<16x16xf32> -> vector<16x16xf32>
    %cst_44 = arith.constant 2.500000e-01 : f32
    %124 = vector.broadcast %cst_44 : f32 to vector<16x16xf32>
    %125 = arith.mulf %123, %124 : vector<16x16xf32>
    %cst_45 = arith.constant dense<0xFF800000> : vector<16xf32>
    %126 = vector.multi_reduction <maximumf>, %125, %cst_45 [1] : vector<16x16xf32> to vector<16xf32>
    %127 = vector.shape_cast %126 : vector<16xf32> to vector<16x1xf32>
    %128 = vector.broadcast %127 : vector<16x1xf32> to vector<16x16xf32>
    %129 = arith.subf %125, %128 : vector<16x16xf32>
    %130 = math.exp %129 : vector<16x16xf32>
    %cst_46 = arith.constant dense<0.000000e+00> : vector<16xf32>
    %131 = vector.multi_reduction <add>, %130, %cst_46 [1] : vector<16x16xf32> to vector<16xf32>
    %132 = vector.shape_cast %131 : vector<16xf32> to vector<16x1xf32>
    %133 = vector.broadcast %132 : vector<16x1xf32> to vector<16x16xf32>
    %134 = arith.divf %130, %133 : vector<16x16xf32>
    %cst_47 = arith.constant dense<0.000000e+00> : vector<16x16xf32>
    %135 = tpu.matmul %134, %122, %cst_47 {dimension_numbers = #tpu.dot_dimension_numbers<[1], [0], [0], [1], [0, 0, 1, 1], [], []>} : vector<16x16xf32>, vector<16x16xf32>, vector<16x16xf32> -> vector<16x16xf32>
    %136 = vector.extract_strided_slice %5 {offsets = [0, 48], sizes = [16, 16], strides = [1, 1]} : vector<16x64xf32> to vector<16x16xf32>
    %137 = arith.addf %135, %136 : vector<16x16xf32>
    %cst_48 = arith.constant dense<0.000000e+00> : vector<16xf32>
    %138 = vector.multi_reduction <add>, %137, %cst_48 [1] : vector<16x16xf32> to vector<16xf32>
    %139 = vector.shape_cast %138 : vector<16xf32> to vector<16x1xf32>
    %cst_49 = arith.constant 1.600000e+01 : f32
    %140 = vector.broadcast %cst_49 : f32 to vector<16x1xf32>
    %141 = arith.divf %139, %140 : vector<16x1xf32>
    %142 = vector.broadcast %141 : vector<16x1xf32> to vector<16x16xf32>
    %143 = arith.subf %137, %142 : vector<16x16xf32>
    %144 = arith.mulf %143, %143 : vector<16x16xf32>
    %cst_50 = arith.constant dense<0.000000e+00> : vector<16xf32>
    %145 = vector.multi_reduction <add>, %144, %cst_50 [1] : vector<16x16xf32> to vector<16xf32>
    %146 = vector.shape_cast %145 : vector<16xf32> to vector<16x1xf32>
    %cst_51 = arith.constant 1.600000e+01 : f32
    %147 = vector.broadcast %cst_51 : f32 to vector<16x1xf32>
    %148 = arith.divf %146, %147 : vector<16x1xf32>
    %149 = vector.broadcast %141 : vector<16x1xf32> to vector<16x16xf32>
    %150 = arith.subf %137, %149 : vector<16x16xf32>
    %cst_52 = arith.constant 9.99999974E-6 : f32
    %151 = vector.broadcast %cst_52 : f32 to vector<16x1xf32>
    %152 = arith.addf %148, %151 : vector<16x1xf32>
    %153 = math.rsqrt %152 : vector<16x1xf32>
    %154 = vector.broadcast %153 : vector<16x1xf32> to vector<16x16xf32>
    %155 = arith.mulf %150, %154 : vector<16x16xf32>
    %156 = tpu.concatenate %47, %83, %119, %155 in 1 : vector<16x16xf32>, vector<16x16xf32>, vector<16x16xf32>, vector<16x16xf32> -> vector<16x64xf32>
    %c0_53 = arith.constant 0 : index
    %c0_54 = arith.constant 0 : index
    %157 = vector.load %arg6[%c0_53, %c0_54] : memref<1x64xf32, #tpu.memory_space<vmem>>, vector<1x64xf32>
    %158 = vector.broadcast %157 : vector<1x64xf32> to vector<16x64xf32>
    %159 = arith.mulf %156, %158 : vector<16x64xf32>
    %c0_55 = arith.constant 0 : index
    %c0_56 = arith.constant 0 : index
    %160 = vector.load %arg7[%c0_55, %c0_56] : memref<1x64xf32, #tpu.memory_space<vmem>>, vector<1x64xf32>
    %161 = vector.broadcast %160 : vector<1x64xf32> to vector<16x64xf32>
    %162 = arith.addf %159, %161 : vector<16x64xf32>
    %c0_57 = arith.constant 0 : index
    %c0_58 = arith.constant 0 : index
    %c0_59 = arith.constant 0 : index
    %163 = vector.load %arg8[%c0_57, %c0_58, %c0_59] : memref<1x16x64xf32, #tpu.memory_space<vmem>>, vector<1x16x64xf32>
    %164 = vector.shape_cast %163 : vector<1x16x64xf32> to vector<16x64xf32>
    %165 = vector.shape_cast %162 : vector<16x64xf32> to vector<1x16x64xf32>
    tpu.vector_store %arg8[%c0_57, %c0_58, %c0_59], %165 {strides = array<i32>} : memref<1x16x64xf32, #tpu.memory_space<vmem>>, vector<1x16x64xf32>,
    return
  }
  func.func @transform_0(%arg0: i32) -> (i32, i32, i32) {
    %c0_i32 = arith.constant 0 : i32
    %c0_i32_0 = arith.constant 0 : i32
    %c0_i32_1 = arith.constant 0 : i32
    return %arg0, %c0_i32, %c0_i32_0 : i32, i32, i32
  }
  func.func @transform_1(%arg0: i32) -> (i32, i32, i32) {
    %c0_i32 = arith.constant 0 : i32
    %c0_i32_0 = arith.constant 0 : i32
    %c0_i32_1 = arith.constant 0 : i32
    return %arg0, %c0_i32, %c0_i32_0 : i32, i32, i32
  }
  func.func @transform_2(%arg0: i32) -> (i32, i32, i32) {
    %c0_i32 = arith.constant 0 : i32
    %c0_i32_0 = arith.constant 0 : i32
    %c0_i32_1 = arith.constant 0 : i32
    return %arg0, %c0_i32, %c0_i32_0 : i32, i32, i32
  }
  func.func @transform_3(%arg0: i32) -> (i32, i32) {
    %c0_i32 = arith.constant 0 : i32
    %c0_i32_0 = arith.constant 0 : i32
    %c0_i32_1 = arith.constant 0 : i32
    return %c0_i32, %c0_i32_0 : i32, i32
  }
  func.func @transform_4(%arg0: i32) -> (i32, i32) {
    %c0_i32 = arith.constant 0 : i32
    %c0_i32_0 = arith.constant 0 : i32
    %c0_i32_1 = arith.constant 0 : i32
    return %c0_i32, %c0_i32_0 : i32, i32
  }
  func.func @transform_5(%arg0: i32) -> (i32, i32) {
    %c0_i32 = arith.constant 0 : i32
    %c0_i32_0 = arith.constant 0 : i32
    %c0_i32_1 = arith.constant 0 : i32
    return %c0_i32, %c0_i32_0 : i32, i32
  }
  func.func @transform_6(%arg0: i32) -> (i32, i32) {
    %c0_i32 = arith.constant 0 : i32
    %c0_i32_0 = arith.constant 0 : i32
    %c0_i32_1 = arith.constant 0 : i32
    return %c0_i32, %c0_i32_0 : i32, i32
  }
  func.func @transform_7(%arg0: i32) -> (i32, i32, i32) {
    %c0_i32 = arith.constant 0 : i32
    %c0_i32_0 = arith.constant 0 : i32
    %c0_i32_1 = arith.constant 0 : i32
    return %arg0, %c0_i32, %c0_i32_0 : i32, i32, i32
  }
}

</mosaic_0001>

<llo_original>
// kernel: tile.13
$region0: #{tile.13}
  #allocation0 [shape = 's32[1]{0}', space=sflag, size = 0x4, scoped, tag = 'scoped memory for tile.13']
  %s0 = inlined_call_operand.vmem [shape: f32[16], index: 0, kind: input, shape index: {}]
  %s1 = inlined_call_operand.vmem [shape: f32[4,16], index: 1, kind: output, shape index: {}]
  // Predicated region
  $region2: #{tile.13} parent=0 // pred_check
    _
  $region3: #{tile.13} parent=0 // pred_check_branch
    %3 = sbr.rel (0) target = $region5
  $region4: #{tile.13} parent=0 // pred_region
    _
  $region5: #{tile.13} parent=0 // pred_fallthru
    _
  %v4 = vld [vmem:[%s0] ss:$0 sm:$0xff]
  %5 = vst [vmem:[%s1] sm:$0xf] %v4

// kernel: tile.14
$region0: #{tile.14}
  %s0 = inlined_call_operand.vmem [shape: f32[4,16], index: 0, kind: input, shape index: {}]
  %s1 = inlined_call_operand.vmem [shape: f32[1,64], index: 1, kind: output, shape index: {}]
  $region1: #{tile.14} parent=0
    #allocation0 [shape = 'u8[4096]{0}', space=vmem, size = 0x1000, scoped, tag = 'scoped mem for output reshape']
    #allocation1 [shape = 'u8[4096]{0}', space=vmem, size = 0x1000, scoped, tag = 'scoped mem for input reshape']
    %s3 = sshllo.u32 0, 4
    %v4 = vld [vmem:[%s0] sm:%s3]
    %5 = vst [vmem:[#allocation1] sm:%s3] %v4
    %v6 = vld [vmem:[#allocation1] sm:$0x1]
    %vm7 = vcmask 130048
    %8 = vst.msk [vmem:[#allocation0] sm:$0x1] %vm7, %v6
    %s9 = scalar_lea.vmem [#allocation1], 3
    %v10 = vld [vmem:[%s9] sm:$0x1]
    %11 = vrot.lane.b32.xlu0 %v10, 48
    %v12 = vpop.permute.xlu0 %11
    %vm13 = vcmask 523648
    %14 = vst.msk [vmem:[#allocation0] sm:$0x1] %vm13, %v12
    %s15 = scalar_lea.vmem [#allocation1], 2
    %v16 = vld [vmem:[%s15] sm:$0x1]
    %17 = vrot.lane.b32.xlu0 %v16, 32
    %v18 = vpop.permute.xlu0 %17
    %vm19 = vcmask 392448
    %20 = vst.msk [vmem:[#allocation0] sm:$0x1] %vm19, %v18
    %s21 = scalar_lea.vmem [#allocation1], 1
    %v22 = vld [vmem:[%s21] sm:$0x1]
    %23 = vrot.lane.b32.xlu0 %v22, 16
    %v24 = vpop.permute.xlu0 %23
    %vm25 = vcmask 261248
    %26 = vst.msk [vmem:[#allocation0] sm:$0x1] %vm25, %v24
    %s28 = sshllo.u32 0, 1
    %v30 = vld [vmem:[#allocation0] sm:%s28]
    %s31 = sshllo.u32 0, 1
    %32 = vst [vmem:[%s1] sm:%s31] %v30

// kernel: my_attention.1
$region0: #{my_attention.1}
  #allocation0 [shape = 'u32[]', space=smem, size = 0x4, offset = 0x4, fixed_abs, tag = 'smem constant byte address 0x4 - core index']
  #allocation1 [shape = 'u32[144,128]{1,0:T(1,128)}', space=vmem, size = 0x12000, scoped, tag = 'internal scratch']
  %s0 = inlined_call_operand.vmem [shape: f32[2,16,64], index: 0, kind: input, shape index: {}]
  %s1 = inlined_call_operand.vmem [shape: f32[2,16,64], index: 1, kind: input, shape index: {}]
  %s2 = inlined_call_operand.vmem [shape: f32[2,16,64], index: 2, kind: input, shape index: {}]
  %s3 = inlined_call_operand.vmem [shape: f32[64,64], index: 3, kind: input, shape index: {}]
  %s4 = inlined_call_operand.vmem [shape: f32[64,128], index: 4, kind: input, shape index: {}]
  %s5 = inlined_call_operand.vmem [shape: f32[1,64], index: 5, kind: input, shape index: {}]
  %s6 = inlined_call_operand.vmem [shape: f32[1,64], index: 6, kind: input, shape index: {}]
  %s7 = inlined_call_operand.vmem [shape: f32[2,16,64], index: 7, kind: output, shape index: {}]
  %s8 = sld [smem:[#allocation0]]
  $region61: #{my_attention.1} parent=0
    _
  %s10 = ssub.s32 1, %s8
  %s11 = scalar_select 0, %s10, %s8
  loop: start=0, step=1, limit=4
  $region2: #{my_attention.1} parent=0 // loop_pre_header
    _
  $region3: #{my_attention.1} parent=0 // loop_header
    %s13 = sphi 0, %s17
    %p14 = scmp.ge.s32.totalorder %s13, 4
    %s23 = sphi 0, %s25
    %s26 = sphi 0, %s23
    %s27 = sphi 0, %s26
    %s43 = sphi 0, %s27
    %s49 = sphi 0, %s51
    %s52 = sphi 0, %s49
    %s53 = sphi 0, %s52
    %s69 = sphi 0, %s53
    %s75 = sphi 0, %s77
    %s78 = sphi 0, %s75
    %s79 = sphi 0, %s78
    %s95 = sphi 0, %s79
    %s99 = sphi 0, %s99
    %s101 = sphi 0, %s99
    %s102 = sphi 0, %s101
    %s116 = sphi 0, %s102
    %s120 = sphi 0, %s120
    %s122 = sphi 0, %s120
    %s123 = sphi 0, %s122
    %s137 = sphi 0, %s123
    %s141 = sphi 0, %s141
    %s143 = sphi 0, %s141
    %s144 = sphi 0, %s143
    %s158 = sphi 0, %s144
    %s162 = sphi 0, %s162
    %s164 = sphi 0, %s162
    %s165 = sphi 0, %s164
    %s179 = sphi 0, %s165
    %s185 = sphi 0, %s187
    %s188 = sphi 0, %s185
    %s189 = sphi 0, %s188
    %s205 = sphi 0, %s189
  $region4: #{my_attention.1} parent=0 // loop_header_branch
    %16 = sbr.rel (%p14) target = $region8
  $region5: #{my_attention.1} parent=0 // loop_body
    %s18 = ssub.s32 %s13, 1
    %s19 = ssub.s32 %s13, 2
    %s20 = sadd.s32 %s13, 1
    %s21 = ssub.s32 %s13, %s20
    %p22 = scmp.eq.s32.totalorder %s21, 0
    %s24 = sadd.s32 %s23, 1
    %s25 = scalar_select %p22, %s23, %s24
    %p28 = pneg %p22
    %p29 = scmp.eq.s32.totalorder %s13, 1
    %p30 = por %p28, %p29
    %p31 = scmp.ne.s32.totalorder %s23, %s26
    %p32 = scmp.eq.s32.totalorder %s13, 0
    %p33 = por %p31, %p32
    %p34 = scmp.ne.s32.totalorder %s23, %s26
    %p35 = scmp.eq.s32.totalorder %s18, 1
    %p36 = por %p34, %p35
    %p37 = scmp.ne.s32.totalorder %s26, %s27
    %p38 = scmp.eq.s32.totalorder %s18, 0
    %p39 = por %p37, %p38
    %p40 = scmp.ne.s32.totalorder %s26, %s27
    %p41 = scmp.eq.s32.totalorder %s19, 1
    %p42 = por %p40, %p41
    %p44 = scmp.ne.s32.totalorder %s27, %s43
    %p45 = scmp.eq.s32.totalorder %s19, 0
    %p46 = por %p44, %p45
    %s47 = ssub.s32 %s13, %s20
    %p48 = scmp.eq.s32.totalorder %s47, 0
    %s50 = sadd.s32 %s49, 1
    %s51 = scalar_select %p48, %s49, %s50
    %p54 = pneg %p48
    %p55 = scmp.eq.s32.totalorder %s13, 1
    %p56 = por %p54, %p55
    %p57 = scmp.ne.s32.totalorder %s49, %s52
    %p58 = scmp.eq.s32.totalorder %s13, 0
    %p59 = por %p57, %p58
    %p60 = scmp.ne.s32.totalorder %s49, %s52
    %p61 = scmp.eq.s32.totalorder %s18, 1
    %p62 = por %p60, %p61
    %p63 = scmp.ne.s32.totalorder %s52, %s53
    %p64 = scmp.eq.s32.totalorder %s18, 0
    %p65 = por %p63, %p64
    %p66 = scmp.ne.s32.totalorder %s52, %s53
    %p67 = scmp.eq.s32.totalorder %s19, 1
    %p68 = por %p66, %p67
    %p70 = scmp.ne.s32.totalorder %s53, %s69
    %p71 = scmp.eq.s32.totalorder %s19, 0
    %p72 = por %p70, %p71
    %s73 = ssub.s32 %s13, %s20
    %p74 = scmp.eq.s32.totalorder %s73, 0
    %s76 = sadd.s32 %s75, 1
    %s77 = scalar_select %p74, %s75, %s76
    %p80 = pneg %p74
    %p81 = scmp.eq.s32.totalorder %s13, 1
    %p82 = por %p80, %p81
    %p83 = scmp.ne.s32.totalorder %s75, %s78
    %p84 = scmp.eq.s32.totalorder %s13, 0
    %p85 = por %p83, %p84
    %p86 = scmp.ne.s32.totalorder %s75, %s78
    %p87 = scmp.eq.s32.totalorder %s18, 1
    %p88 = por %p86, %p87
    %p89 = scmp.ne.s32.totalorder %s78, %s79
    %p90 = scmp.eq.s32.totalorder %s18, 0
    %p91 = por %p89, %p90
    %p92 = scmp.ne.s32.totalorder %s78, %s79
    %p93 = scmp.eq.s32.totalorder %s19, 1
    %p94 = por %p92, %p93
    %p96 = scmp.ne.s32.totalorder %s79, %s95
    %p97 = scmp.eq.s32.totalorder %s19, 0
    %p98 = por %p96, %p97
    %s100 = sadd.s32 %s99, 1
    %p103 = scmp.eq.s32.totalorder %s13, 1
    %p104 = scmp.ne.s32.totalorder %s99, %s101
    %p105 = scmp.eq.s32.totalorder %s13, 0
    %p106 = por %p104, %p105
    %p107 = scmp.ne.s32.totalorder %s99, %s101
    %p108 = scmp.eq.s32.totalorder %s18, 1
    %p109 = por %p107, %p108
    %p110 = scmp.ne.s32.totalorder %s101, %s102
    %p111 = scmp.eq.s32.totalorder %s18, 0
    %p112 = por %p110, %p111
    %p113 = scmp.ne.s32.totalorder %s101, %s102
    %p114 = scmp.eq.s32.totalorder %s19, 1
    %p115 = por %p113, %p114
    %p117 = scmp.ne.s32.totalorder %s102, %s116
    %p118 = scmp.eq.s32.totalorder %s19, 0
    %p119 = por %p117, %p118
    %s121 = sadd.s32 %s120, 1
    %p124 = scmp.eq.s32.totalorder %s13, 1
    %p125 = scmp.ne.s32.totalorder %s120, %s122
    %p126 = scmp.eq.s32.totalorder %s13, 0
    %p127 = por %p125, %p126
    %p128 = scmp.ne.s32.totalorder %s120, %s122
    %p129 = scmp.eq.s32.totalorder %s18, 1
    %p130 = por %p128, %p129
    %p131 = scmp.ne.s32.totalorder %s122, %s123
    %p132 = scmp.eq.s32.totalorder %s18, 0
    %p133 = por %p131, %p132
    %p134 = scmp.ne.s32.totalorder %s122, %s123
    %p135 = scmp.eq.s32.totalorder %s19, 1
    %p136 = por %p134, %p135
    %p138 = scmp.ne.s32.totalorder %s123, %s137
    %p139 = scmp.eq.s32.totalorder %s19, 0
    %p140 = por %p138, %p139
    %s142 = sadd.s32 %s141, 1
    %p145 = scmp.eq.s32.totalorder %s13, 1
    %p146 = scmp.ne.s32.totalorder %s141, %s143
    %p147 = scmp.eq.s32.totalorder %s13, 0
    %p148 = por %p146, %p147
    %p149 = scmp.ne.s32.totalorder %s141, %s143
    %p150 = scmp.eq.s32.totalorder %s18, 1
    %p151 = por %p149, %p150
    %p152 = scmp.ne.s32.totalorder %s143, %s144
    %p153 = scmp.eq.s32.totalorder %s18, 0
    %p154 = por %p152, %p153
    %p155 = scmp.ne.s32.totalorder %s143, %s144
    %p156 = scmp.eq.s32.totalorder %s19, 1
    %p157 = por %p155, %p156
    %p159 = scmp.ne.s32.totalorder %s144, %s158
    %p160 = scmp.eq.s32.totalorder %s19, 0
    %p161 = por %p159, %p160
    %s163 = sadd.s32 %s162, 1
    %p166 = scmp.eq.s32.totalorder %s13, 1
    %p167 = scmp.ne.s32.totalorder %s162, %s164
    %p168 = scmp.eq.s32.totalorder %s13, 0
    %p169 = por %p167, %p168
    %p170 = scmp.ne.s32.totalorder %s162, %s164
    %p171 = scmp.eq.s32.totalorder %s18, 1
    %p172 = por %p170, %p171
    %p173 = scmp.ne.s32.totalorder %s164, %s165
    %p174 = scmp.eq.s32.totalorder %s18, 0
    %p175 = por %p173, %p174
    %p176 = scmp.ne.s32.totalorder %s164, %s165
    %p177 = scmp.eq.s32.totalorder %s19, 1
    %p178 = por %p176, %p177
    %p180 = scmp.ne.s32.totalorder %s165, %s179
    %p181 = scmp.eq.s32.totalorder %s19, 0
    %p182 = por %p180, %p181
    %s183 = ssub.s32 %s13, %s20
    %p184 = scmp.eq.s32.totalorder %s183, 0
    %s186 = sadd.s32 %s185, 1
    %s187 = scalar_select %p184, %s185, %s186
    %p190 = pneg %p184
    %p191 = scmp.eq.s32.totalorder %s13, 1
    %p192 = por %p190, %p191
    %p193 = scmp.ne.s32.totalorder %s185, %s188
    %p194 = scmp.eq.s32.totalorder %s13, 0
    %p195 = por %p193, %p194
    %p196 = scmp.ne.s32.totalorder %s185, %s188
    %p197 = scmp.eq.s32.totalorder %s18, 1
    %p198 = por %p196, %p197
    %p199 = scmp.ne.s32.totalorder %s188, %s189
    %p200 = scmp.eq.s32.totalorder %s18, 0
    %p201 = por %p199, %p200
    %p202 = scmp.ne.s32.totalorder %s188, %s189
    %p203 = scmp.eq.s32.totalorder %s19, 1
    %p204 = por %p202, %p203
    %p206 = scmp.ne.s32.totalorder %s189, %s205
    %p207 = scmp.eq.s32.totalorder %s19, 0
    %p208 = por %p206, %p207
    %p209 = scmp.le.s32.totalorder 1, %s13
    %p210 = scmp.lt.s32.totalorder %s13, 3
    %p211 = pnand %p209, %p210
    %p212 = pneg %p211
    // Predicated region
    $region9: #{my_attention.1} parent=5 // pred_check
      _
    $region10: #{my_attention.1} parent=5 // pred_check_branch
      %214 = sbr.rel (%p211) target = $region12
    $region11: #{my_attention.1} parent=5 // pred_region
      %s215 = ssub.s32 %s13, 1
      // Predicated region
      $region13: #{my_attention.1} parent=11 // pred_check
        %p216 = pneg %p112
      $region14: #{my_attention.1} parent=11 // pred_check_branch
        %218 = sbr.rel (%p216) target = $region16
      $region15: #{my_attention.1} parent=11 // pred_region
        _
      $region16: #{my_attention.1} parent=11 // pred_fallthru
        _
      // Predicated region
      $region17: #{my_attention.1} parent=11 // pred_check
        %p219 = pneg %p133
      $region18: #{my_attention.1} parent=11 // pred_check_branch
        %221 = sbr.rel (%p219) target = $region20
      $region19: #{my_attention.1} parent=11 // pred_region
        _
      $region20: #{my_attention.1} parent=11 // pred_fallthru
        _
      // Predicated region
      $region21: #{my_attention.1} parent=11 // pred_check
        %p222 = pneg %p154
      $region22: #{my_attention.1} parent=11 // pred_check_branch
        %224 = sbr.rel (%p222) target = $region24
      $region23: #{my_attention.1} parent=11 // pred_region
        _
      $region24: #{my_attention.1} parent=11 // pred_fallthru
        _
      // Predicated region
      $region25: #{my_attention.1} parent=11 // pred_check
        %p225 = pneg %p175
      $region26: #{my_attention.1} parent=11 // pred_check_branch
        %227 = sbr.rel (%p225) target = $region28
      $region27: #{my_attention.1} parent=11 // pred_region
        _
      $region28: #{my_attention.1} parent=11 // pred_fallthru
        _
    $region12: #{my_attention.1} parent=5 // pred_fallthru
      _
    %p228 = scmp.lt.s32.totalorder %s13, 2
    // Predicated region
    $region29: #{my_attention.1} parent=5 // pred_check
      %p229 = pneg %p228
    $region30: #{my_attention.1} parent=5 // pred_check_branch
      %231 = sbr.rel (%p229) target = $region32
    $region31: #{my_attention.1} parent=5 // pred_region
      // Predicated region
      $region33: #{my_attention.1} parent=31 // pred_check
        %p232 = pneg %p33
      $region34: #{my_attention.1} parent=31 // pred_check_branch
        %234 = sbr.rel (%p232) target = $region36
      $region35: #{my_attention.1} parent=31 // pred_region
        %p235 = scmp.lt.s32.totalorder %s13, 1
        %s236 = scalar_select %p235, %s13, 1
        %s237 = smul.addr %s236, 2
        %s238 = smul.addr %s237, 8
        %s239 = scalar_lea.vmem %s0, %s238
      $region36: #{my_attention.1} parent=31 // pred_fallthru
        _
      // Predicated region
      $region37: #{my_attention.1} parent=31 // pred_check
        %p240 = pneg %p59
      $region38: #{my_attention.1} parent=31 // pred_check_branch
        %242 = sbr.rel (%p240) target = $region40
      $region39: #{my_attention.1} parent=31 // pred_region
        %p243 = scmp.lt.s32.totalorder %s13, 1
        %s244 = scalar_select %p243, %s13, 1
        %s245 = smul.addr %s244, 2
        %s246 = smul.addr %s245, 8
        %s247 = scalar_lea.vmem %s1, %s246
      $region40: #{my_attention.1} parent=31 // pred_fallthru
        _
      // Predicated region
      $region41: #{my_attention.1} parent=31 // pred_check
        %p248 = pneg %p85
      $region42: #{my_attention.1} parent=31 // pred_check_branch
        %250 = sbr.rel (%p248) target = $region44
      $region43: #{my_attention.1} parent=31 // pred_region
        %p251 = scmp.lt.s32.totalorder %s13, 1
        %s252 = scalar_select %p251, %s13, 1
        %s253 = smul.addr %s252, 2
        %s254 = smul.addr %s253, 8
        %s255 = scalar_lea.vmem %s2, %s254
      $region44: #{my_attention.1} parent=31 // pred_fallthru
        _
    $region32: #{my_attention.1} parent=5 // pred_fallthru
      _
    %p256 = scmp.le.s32.totalorder 1, %s13
    %p257 = scmp.lt.s32.totalorder %s13, 3
    %p258 = pnand %p256, %p257
    %p259 = pneg %p258
    // Predicated region
    $region45: #{my_attention.1} parent=5 // pred_check
      _
    $region46: #{my_attention.1} parent=5 // pred_check_branch
      %261 = sbr.rel (%p258) target = $region48
    $region47: #{my_attention.1} parent=5 // pred_region
      %s262 = ssub.s32 %s13, 1
      %p263 = scmp.lt.s32.totalorder %s18, 1
      %s264 = scalar_select %p263, %s18, 1
      %s265 = smul.addr %s264, 2
      %s266 = smul.addr %s265, 8
      %s267 = scalar_lea.vmem %s0, %s266
      %p268 = pneg %p39
      %p269 = pneg %p36
      %p270 = scmp.lt.s32.totalorder %s18, 1
      %s271 = scalar_select %p270, %s18, 1
      %s272 = smul.addr %s271, 2
      %s273 = smul.addr %s272, 8
      %s274 = scalar_lea.vmem %s1, %s273
      %p275 = pneg %p65
      %p276 = pneg %p62
      %p277 = scmp.lt.s32.totalorder %s18, 1
      %s278 = scalar_select %p277, %s18, 1
      %s279 = smul.addr %s278, 2
      %s280 = smul.addr %s279, 8
      %s281 = scalar_lea.vmem %s2, %s280
      %p282 = pneg %p91
      %p283 = pneg %p88
      %p284 = pneg %p112
      %p285 = pneg %p109
      %p286 = pneg %p133
      %p287 = pneg %p130
      %p288 = pneg %p154
      %p289 = pneg %p151
      %p290 = pneg %p175
      %p291 = pneg %p172
      %p292 = pneg %p201
      %p293 = pneg %p198
      %p294 = scmp.lt.s32.totalorder %s18, 1
      %s295 = scalar_select %p294, %s18, 1
      %s296 = smul.addr %s295, 2
      %s297 = smul.addr %s296, 8
      %s298 = scalar_lea.vmem %s7, %s297
      %p299 = scmp.lt.s32.totalorder %s18, 1
      %s300 = scalar_select %p299, %s18, 1
      %s301 = smul.addr %s300, 2
      %s302 = smul.addr %s301, 8
      %s303 = scalar_lea.vmem %s0, %s302
      %p304 = scmp.lt.s32.totalorder %s18, 1
      %s305 = scalar_select %p304, %s18, 1
      %s306 = smul.addr %s305, 2
      %s307 = smul.addr %s306, 8
      %s308 = scalar_lea.vmem %s1, %s307
      %p309 = scmp.lt.s32.totalorder %s18, 1
      %s310 = scalar_select %p309, %s18, 1
      %s311 = smul.addr %s310, 2
      %s312 = smul.addr %s311, 8
      %s313 = scalar_lea.vmem %s2, %s312
      %p314 = scmp.lt.s32.totalorder %s18, 1
      %s315 = scalar_select %p314, %s18, 1
      %s316 = smul.addr %s315, 2
      %s317 = smul.addr %s316, 8
      %s318 = scalar_lea.vmem %s7, %s317
      %v319 = vld [vmem:[%s303] sm:$0xff]
      %v320 = vld [vmem:[%s303 + $0x8] sm:$0xff]
      %v321 = vld [vmem:[%s308] sm:$0xff]
      %v322 = vld [vmem:[%s308 + $0x8] sm:$0xff]
      %v323 = vld [vmem:[%s313] sm:$0xff]
      %v324 = vld [vmem:[%s313 + $0x8] sm:$0xff]
      %v325 = vld [vmem:[%s3] sm:$0xff]
      %v326 = vld [vmem:[%s3 + $0x8] sm:$0xff]
      %v327 = vld [vmem:[%s3 + $0x10] sm:$0xff]
      %v328 = vld [vmem:[%s3 + $0x18] sm:$0xff]
      %v329 = vld [vmem:[%s3 + $0x20] sm:$0xff]
      %v330 = vld [vmem:[%s3 + $0x28] sm:$0xff]
      %v331 = vld [vmem:[%s3 + $0x30] sm:$0xff]
      %v332 = vld [vmem:[%s3 + $0x38] sm:$0xff]
      %vm333 = vcmask 523264
      %v335 = vsel %vm333, %v319, 0
      %v338 = vsel %vm333, %v320, 0
      %340 = vmatprep.subr.mxu0 0.0
      %341 = vmatpush1.msra.mxu0 %v325
      %342 = vmatprep.subr.mxu0 0.0
      %343 = vmatpush1.msra.mxu0 %v326
      %344 = vmatprep.subr.mxu0 0.0
      %345 = vmatpush1.msra.mxu0 %v327
      %346 = vmatprep.subr.mxu0 0.0
      %347 = vmatpush1.msra.mxu0 %v328
      %348 = vmatprep.subr.mxu0 0.0
      %349 = vmatpush1.msra.mxu0 %v329
      %350 = vmatprep.subr.mxu0 0.0
      %351 = vmatpush1.msra.mxu0 %v330
      %352 = vmatprep.subr.mxu0 0.0
      %353 = vmatpush1.msra.mxu0 %v331
      %354 = vmatprep.subr.mxu0 0.0
      %355 = vmatpush1.msra.mxu0 %v332
      %356 = vmatprep.subr.mxu0 0.0
      %357 = vmatpush1.msra.mxu0 0.0
      %358 = vmatprep.subr.mxu0 0.0
      %359 = vmatpush1.msra.mxu0 0.0
      %360 = vmatprep.subr.mxu0 0.0
      %361 = vmatpush1.msra.mxu0 0.0
      %362 = vmatprep.subr.mxu0 0.0
      %363 = vmatpush1.msra.mxu0 0.0
      %364 = vmatprep.subr.mxu0 0.0
      %365 = vmatpush1.msra.mxu0 0.0
      %366 = vmatprep.subr.mxu0 0.0
      %367 = vmatpush1.msra.mxu0 0.0
      %368 = vmatprep.subr.mxu0 0.0
      %369 = vmatpush1.msra.mxu0 0.0
      %370 = vmatprep.subr.mxu0 0.0
      %371 = vmatpush1.msra.mxu0 0.0
      %372 = vmatprep.subr.mxu0 0.0
      %373 = vmatpush1.msra.mxu0 0.0
      %374 = vmatprep.subr.mxu0 0.0
      %375 = vmatpush1.msra.mxu0 0.0
      %376 = vmatprep.subr.mxu0 0.0
      %377 = vmatpush1.msra.mxu0 0.0
      %378 = vmatprep.subr.mxu0 0.0
      %379 = vmatpush1.msra.mxu0 0.0
      %380 = vmatprep.subr.mxu0 0.0
      %381 = vmatpush1.msra.mxu0 0.0
      %382 = vmatprep.subr.mxu0 0.0
      %383 = vmatpush1.msra.mxu0 0.0
      %384 = vmatprep.subr.mxu0 0.0
      %385 = vmatpush1.msra.mxu0 0.0
      %386 = vmatprep.subr.mxu0 0.0
      %387 = vmatpush1.msra.mxu0 0.0
      %388 = vmatprep.subr.mxu0 0.0
      %389 = vmatpush1.msra.mxu0 0.0
      %390 = vmatprep.subr.mxu0 0.0
      %391 = vmatpush1.msra.mxu0 0.0
      %392 = vmatprep.subr.mxu0 0.0
      %393 = vmatpush1.msra.mxu0 0.0
      %394 = vmatprep.subr.mxu0 0.0
      %395 = vmatpush1.msra.mxu0 0.0
      %396 = vmatprep.subr.mxu0 0.0
      %397 = vmatpush1.msra.mxu0 0.0
      %398 = vmatprep.subr.mxu0 0.0
      %399 = vmatpush1.msra.mxu0 0.0
      %400 = vmatprep.subr.mxu0 0.0
      %401 = vmatpush1.msra.mxu0 0.0
      %402 = vmatprep.subr.mxu0 0.0
      %403 = vmatpush1.msra.mxu0 0.0
      %404 = vmatprep.mubr.f32.mxu0 0.0
      %405 = vmatmul.mubr.f32.gmra.mrb[0].mxu0 %v335
      %v406 = vpop.f32.mrb[0].mxu0
      %v407 = vadd.f32 0.0, %v406
      %v408 = vpop.f32.mrb[0].mxu0
      %409 = vmatprep.mubr.f32.mxu0 0.0
      %410 = vmatmul.mubr.f32.gmra.mrb[0].mxu0 %v338
      %v411 = vpop.f32.mrb[0].mxu0
      %v412 = vadd.f32 0.0, %v411
      %v413 = vpop.f32.mrb[0].mxu0
      %414 = vdwg.mxu0
      %v415 = vld [vmem:[%s4] sm:$0xff]
      %v416 = vld [vmem:[%s4 + $0x8] sm:$0xff]
      %v417 = vld [vmem:[%s4 + $0x10] sm:$0xff]
      %v418 = vld [vmem:[%s4 + $0x18] sm:$0xff]
      %v419 = vld [vmem:[%s4 + $0x20] sm:$0xff]
      %v420 = vld [vmem:[%s4 + $0x28] sm:$0xff]
      %v421 = vld [vmem:[%s4 + $0x30] sm:$0xff]
      %v422 = vld [vmem:[%s4 + $0x38] sm:$0xff]
      %v424 = vsel %vm333, %v321, 0
      %v427 = vsel %vm333, %v322, 0
      %429 = vmatprep.subr.mxu0 0.0
      %430 = vmatpush1.msra.mxu0 %v415
      %431 = vmatprep.subr.mxu0 0.0
      %432 = vmatpush1.msra.mxu0 %v416
      %433 = vmatprep.subr.mxu0 0.0
      %434 = vmatpush1.msra.mxu0 %v417
      %435 = vmatprep.subr.mxu0 0.0
      %436 = vmatpush1.msra.mxu0 %v418
      %437 = vmatprep.subr.mxu0 0.0
      %438 = vmatpush1.msra.mxu0 %v419
      %439 = vmatprep.subr.mxu0 0.0
      %440 = vmatpush1.msra.mxu0 %v420
      %441 = vmatprep.subr.mxu0 0.0
      %442 = vmatpush1.msra.mxu0 %v421
      %443 = vmatprep.subr.mxu0 0.0
      %444 = vmatpush1.msra.mxu0 %v422
      %445 = vmatprep.subr.mxu0 0.0
      %446 = vmatpush1.msra.mxu0 0.0
      %447 = vmatprep.subr.mxu0 0.0
      %448 = vmatpush1.msra.mxu0 0.0
      %449 = vmatprep.subr.mxu0 0.0
      %450 = vmatpush1.msra.mxu0 0.0
      %451 = vmatprep.subr.mxu0 0.0
      %452 = vmatpush1.msra.mxu0 0.0
      %453 = vmatprep.subr.mxu0 0.0
      %454 = vmatpush1.msra.mxu0 0.0
      %455 = vmatprep.subr.mxu0 0.0
      %456 = vmatpush1.msra.mxu0 0.0
      %457 = vmatprep.subr.mxu0 0.0
      %458 = vmatpush1.msra.mxu0 0.0
      %459 = vmatprep.subr.mxu0 0.0
      %460 = vmatpush1.msra.mxu0 0.0
      %461 = vmatprep.subr.mxu0 0.0
      %462 = vmatpush1.msra.mxu0 0.0
      %463 = vmatprep.subr.mxu0 0.0
      %464 = vmatpush1.msra.mxu0 0.0
      %465 = vmatprep.subr.mxu0 0.0
      %466 = vmatpush1.msra.mxu0 0.0
      %467 = vmatprep.subr.mxu0 0.0
      %468 = vmatpush1.msra.mxu0 0.0
      %469 = vmatprep.subr.mxu0 0.0
      %470 = vmatpush1.msra.mxu0 0.0
      %471 = vmatprep.subr.mxu0 0.0
      %472 = vmatpush1.msra.mxu0 0.0
      %473 = vmatprep.subr.mxu0 0.0
      %474 = vmatpush1.msra.mxu0 0.0
      %475 = vmatprep.subr.mxu0 0.0
      %476 = vmatpush1.msra.mxu0 0.0
      %477 = vmatprep.subr.mxu0 0.0
      %478 = vmatpush1.msra.mxu0 0.0
      %479 = vmatprep.subr.mxu0 0.0
      %480 = vmatpush1.msra.mxu0 0.0
      %481 = vmatprep.subr.mxu0 0.0
      %482 = vmatpush1.msra.mxu0 0.0
      %483 = vmatprep.subr.mxu0 0.0
      %484 = vmatpush1.msra.mxu0 0.0
      %485 = vmatprep.subr.mxu0 0.0
      %486 = vmatpush1.msra.mxu0 0.0
      %487 = vmatprep.subr.mxu0 0.0
      %488 = vmatpush1.msra.mxu0 0.0
      %489 = vmatprep.subr.mxu0 0.0
      %490 = vmatpush1.msra.mxu0 0.0
      %491 = vmatprep.subr.mxu0 0.0
      %492 = vmatpush1.msra.mxu0 0.0
      %493 = vmatprep.mubr.f32.mxu0 0.0
      %494 = vmatmul.mubr.f32.gmra.mrb[0].mxu0 %v424
      %v495 = vpop.f32.mrb[0].mxu0
      %v496 = vadd.f32 0.0, %v495
      %v497 = vpop.f32.mrb[0].mxu0
      %498 = vmatprep.mubr.f32.mxu0 0.0
      %499 = vmatmul.mubr.f32.gmra.mrb[0].mxu0 %v427
      %v500 = vpop.f32.mrb[0].mxu0
      %v501 = vadd.f32 0.0, %v500
      %v502 = vpop.f32.mrb[0].mxu0
      %503 = vdwg.mxu0
      %vm504 = vcmask 130048
      %v506 = vsel %vm504, %v407, 0
      %v509 = vsel %vm504, %v412, 0
      %v512 = vsel %vm504, %v496, 0
      %v515 = vsel %vm504, %v501, 0
      %517 = vmatprep.subr.mxu0 0.0
      %518 = vmatpush1.xpose.msra.mxu0 %v512
      %519 = vmatprep.subr.mxu0 0.0
      %520 = vmatpush1.xpose.msra.mxu0 %v515
      %521 = vmatprep.subr.mxu0 0.0
      %522 = vmatpush1.xpose.msra.mxu0 0.0
      %523 = vmatprep.subr.mxu0 0.0
      %524 = vmatpush1.xpose.msra.mxu0 0.0
      %525 = vmatprep.subr.mxu0 0.0
      %526 = vmatpush1.xpose.msra.mxu0 0.0
      %527 = vmatprep.subr.mxu0 0.0
      %528 = vmatpush1.xpose.msra.mxu0 0.0
      %529 = vmatprep.subr.mxu0 0.0
      %530 = vmatpush1.xpose.msra.mxu0 0.0
      %531 = vmatprep.subr.mxu0 0.0
      %532 = vmatpush1.xpose.msra.mxu0 0.0
      %533 = vmatprep.subr.mxu0 0.0
      %534 = vmatpush1.xpose.msra.mxu0 0.0
      %535 = vmatprep.subr.mxu0 0.0
      %536 = vmatpush1.xpose.msra.mxu0 0.0
      %537 = vmatprep.subr.mxu0 0.0
      %538 = vmatpush1.xpose.msra.mxu0 0.0
      %539 = vmatprep.subr.mxu0 0.0
      %540 = vmatpush1.xpose.msra.mxu0 0.0
      %541 = vmatprep.subr.mxu0 0.0
      %542 = vmatpush1.xpose.msra.mxu0 0.0
      %543 = vmatprep.subr.mxu0 0.0
      %544 = vmatpush1.xpose.msra.mxu0 0.0
      %545 = vmatprep.subr.mxu0 0.0
      %546 = vmatpush1.xpose.msra.mxu0 0.0
      %547 = vmatprep.subr.mxu0 0.0
      %548 = vmatpush1.xpose.msra.mxu0 0.0
      %549 = vmatprep.subr.mxu0 0.0
      %550 = vmatpush1.xpose.msra.mxu0 0.0
      %551 = vmatprep.subr.mxu0 0.0
      %552 = vmatpush1.xpose.msra.mxu0 0.0
      %553 = vmatprep.subr.mxu0 0.0
      %554 = vmatpush1.xpose.msra.mxu0 0.0
      %555 = vmatprep.subr.mxu0 0.0
      %556 = vmatpush1.xpose.msra.mxu0 0.0
      %557 = vmatprep.subr.mxu0 0.0
      %558 = vmatpush1.xpose.msra.mxu0 0.0
      %559 = vmatprep.subr.mxu0 0.0
      %560 = vmatpush1.xpose.msra.mxu0 0.0
      %561 = vmatprep.subr.mxu0 0.0
      %562 = vmatpush1.xpose.msra.mxu0 0.0
      %563 = vmatprep.subr.mxu0 0.0
      %564 = vmatpush1.xpose.msra.mxu0 0.0
      %565 = vmatprep.subr.mxu0 0.0
      %566 = vmatpush1.xpose.msra.mxu0 0.0
      %567 = vmatprep.subr.mxu0 0.0
      %568 = vmatpush1.xpose.msra.mxu0 0.0
      %569 = vmatprep.subr.mxu0 0.0
      %570 = vmatpush1.xpose.msra.mxu0 0.0
      %571 = vmatprep.subr.mxu0 0.0
      %572 = vmatpush1.xpose.msra.mxu0 0.0
      %573 = vmatprep.subr.mxu0 0.0
      %574 = vmatpush1.xpose.msra.mxu0 0.0
      %575 = vmatprep.subr.mxu0 0.0
      %576 = vmatpush1.xpose.msra.mxu0 0.0
      %577 = vmatprep.subr.mxu0 0.0
      %578 = vmatpush1.xpose.msra.mxu0 0.0
      %579 = vmatprep.subr.mxu0 0.0
      %580 = vmatpush1.xpose.msra.mxu0 0.0
      %581 = vmatprep.mubr.f32.mxu0 0.0
      %582 = vmatmul.mubr.f32.gmra.mrb[0].mxu0 %v506
      %v583 = vpop.f32.mrb[0].mxu0
      %v584 = vadd.f32 0.0, %v583
      %v585 = vpop.f32.mrb[0].mxu0
      %586 = vmatprep.mubr.f32.mxu0 0.0
      %587 = vmatmul.mubr.f32.gmra.mrb[0].mxu0 %v509
      %v588 = vpop.f32.mrb[0].mxu0
      %v589 = vadd.f32 0.0, %v588
      %v590 = vpop.f32.mrb[0].mxu0
      %591 = vdwg.mxu0
      %v592 = vmul.f32 %v584, 0.25
      %v593 = vmul.f32 %v589, 0.25
      %v594 = vsel %vm504, %v592, -inf
      %595 = vmax.xlane.f32.xlu0 %v594
      %v596 = vpop.xlane.xlu0 %595
      %v597 = vsel %vm504, %v593, -inf
      %598 = vmax.xlane.f32.xlu0 %v597
      %v599 = vpop.xlane.xlu0 %598
      %v600 = vsub.f32 %v592, %v596
      %v601 = vsub.f32 %v593, %v599
      %v602 = vmul.f32 %v600, 1.442695
      %v603 = vpow.pop %v602
      %v604 = vmul.f32 %v601, 1.442695
      %v605 = vpow.pop %v604
      %v606 = vsel %vm504, %v603, 0.0
      %607 = vadd.xlane.f32.xlu0 %v606
      %v608 = vpop.xlane.xlu0 %607
      %v609 = vsel %vm504, %v605, 0.0
      %610 = vadd.xlane.f32.xlu0 %v609
      %v611 = vpop.xlane.xlu0 %610
      %v612 = vrcp.pop %v608
      %v613 = vmul.f32 %v603, %v612
      %v614 = vrcp.pop %v611
      %v615 = vmul.f32 %v605, %v614
      %616 = vrot.lane.b32.xlu0 %v496, 64
      %v617 = vpop.permute.xlu0 %616
      %618 = vrot.lane.b32.xlu0 %v501, 64
      %v619 = vpop.permute.xlu0 %618
      %v623 = vsel %vm504, %v613, 0
      %v626 = vsel %vm504, %v615, 0
      %628 = vmatprep.subr.mxu0 0.0
      %629 = vmatpush1.msra.mxu0 %v617
      %630 = vmatprep.subr.mxu0 0.0
      %631 = vmatpush1.msra.mxu0 %v619
      %632 = vmatprep.subr.mxu0 0.0
      %633 = vmatpush1.msra.mxu0 0.0
      %634 = vmatprep.subr.mxu0 0.0
      %635 = vmatpush1.msra.mxu0 0.0
      %636 = vmatprep.subr.mxu0 0.0
      %637 = vmatpush1.msra.mxu0 0.0
      %638 = vmatprep.subr.mxu0 0.0
      %639 = vmatpush1.msra.mxu0 0.0
      %640 = vmatprep.subr.mxu0 0.0
      %641 = vmatpush1.msra.mxu0 0.0
      %642 = vmatprep.subr.mxu0 0.0
      %643 = vmatpush1.msra.mxu0 0.0
      %644 = vmatprep.subr.mxu0 0.0
      %645 = vmatpush1.msra.mxu0 0.0
      %646 = vmatprep.subr.mxu0 0.0
      %647 = vmatpush1.msra.mxu0 0.0
      %648 = vmatprep.subr.mxu0 0.0
      %649 = vmatpush1.msra.mxu0 0.0
      %650 = vmatprep.subr.mxu0 0.0
      %651 = vmatpush1.msra.mxu0 0.0
      %652 = vmatprep.subr.mxu0 0.0
      %653 = vmatpush1.msra.mxu0 0.0
      %654 = vmatprep.subr.mxu0 0.0
      %655 = vmatpush1.msra.mxu0 0.0
      %656 = vmatprep.subr.mxu0 0.0
      %657 = vmatpush1.msra.mxu0 0.0
      %658 = vmatprep.subr.mxu0 0.0
      %659 = vmatpush1.msra.mxu0 0.0
      %660 = vmatprep.subr.mxu0 0.0
      %661 = vmatpush1.msra.mxu0 0.0
      %662 = vmatprep.subr.mxu0 0.0
      %663 = vmatpush1.msra.mxu0 0.0
      %664 = vmatprep.subr.mxu0 0.0
      %665 = vmatpush1.msra.mxu0 0.0
      %666 = vmatprep.subr.mxu0 0.0
      %667 = vmatpush1.msra.mxu0 0.0
      %668 = vmatprep.subr.mxu0 0.0
      %669 = vmatpush1.msra.mxu0 0.0
      %670 = vmatprep.subr.mxu0 0.0
      %671 = vmatpush1.msra.mxu0 0.0
      %672 = vmatprep.subr.mxu0 0.0
      %673 = vmatpush1.msra.mxu0 0.0
      %674 = vmatprep.subr.mxu0 0.0
      %675 = vmatpush1.msra.mxu0 0.0
      %676 = vmatprep.subr.mxu0 0.0
      %677 = vmatpush1.msra.mxu0 0.0
      %678 = vmatprep.subr.mxu0 0.0
      %679 = vmatpush1.msra.mxu0 0.0
      %680 = vmatprep.subr.mxu0 0.0
      %681 = vmatpush1.msra.mxu0 0.0
      %682 = vmatprep.subr.mxu0 0.0
      %683 = vmatpush1.msra.mxu0 0.0
      %684 = vmatprep.subr.mxu0 0.0
      %685 = vmatpush1.msra.mxu0 0.0
      %686 = vmatprep.subr.mxu0 0.0
      %687 = vmatpush1.msra.mxu0 0.0
      %688 = vmatprep.subr.mxu0 0.0
      %689 = vmatpush1.msra.mxu0 0.0
      %690 = vmatprep.subr.mxu0 0.0
      %691 = vmatpush1.msra.mxu0 0.0
      %692 = vmatprep.mubr.f32.mxu0 0.0
      %693 = vmatmul.mubr.f32.gmra.mrb[0].mxu0 %v623
      %v694 = vpop.f32.mrb[0].mxu0
      %v695 = vadd.f32 %v323, %v694
      %v696 = vpop.f32.mrb[0].mxu0
      %697 = vmatprep.mubr.f32.mxu0 0.0
      %698 = vmatmul.mubr.f32.gmra.mrb[0].mxu0 %v626
      %v699 = vpop.f32.mrb[0].mxu0
      %v700 = vadd.f32 %v324, %v699
      %v701 = vpop.f32.mrb[0].mxu0
      %702 = vdwg.mxu0
      %v703 = vsel %vm504, %v695, 0.0
      %704 = vadd.xlane.f32.xlu0 %v703
      %v705 = vpop.xlane.xlu0 %704
      %v706 = vsel %vm504, %v700, 0.0
      %707 = vadd.xlane.f32.xlu0 %v706
      %v708 = vpop.xlane.xlu0 %707
      %v709 = vrcp.pop 16.0
      %v710 = vmul.f32 %v705, %v709
      %v711 = vmul.f32 %v708, %v709
      %v712 = vsub.f32 %v695, %v710
      %v713 = vsub.f32 %v700, %v711
      %v714 = vmul.f32 %v712, %v712
      %v715 = vmul.f32 %v713, %v713
      %v716 = vsel %vm504, %v714, 0.0
      %717 = vadd.xlane.f32.xlu0 %v716
      %v718 = vpop.xlane.xlu0 %717
      %v719 = vsel %vm504, %v715, 0.0
      %720 = vadd.xlane.f32.xlu0 %v719
      %v721 = vpop.xlane.xlu0 %720
      %v722 = vmul.f32 %v718, %v709
      %v723 = vmul.f32 %v721, %v709
      %v724 = vadd.f32 %v722, 1e-05
      %v725 = vadd.f32 %v723, 1e-05
      %v726 = vrsqrt.pop %v724
      %v727 = vrsqrt.pop %v725
      %v728 = vmul.f32 %v712, %v726
      %v729 = vmul.f32 %v713, %v727
      %730 = vrot.lane.b32.xlu0 %v407, 112
      %v731 = vpop.permute.xlu0 %730
      %732 = vrot.lane.b32.xlu0 %v412, 112
      %v733 = vpop.permute.xlu0 %732
      %734 = vrot.lane.b32.xlu0 %v496, 112
      %v735 = vpop.permute.xlu0 %734
      %736 = vrot.lane.b32.xlu0 %v501, 112
      %v737 = vpop.permute.xlu0 %736
      %v738 = vsel %vm504, %v731, 0
      %v740 = vsel %vm504, %v733, 0
      %v742 = vsel %vm504, %v735, 0
      %v744 = vsel %vm504, %v737, 0
      %746 = vmatprep.subr.mxu0 0.0
      %747 = vmatpush1.xpose.msra.mxu0 %v742
      %748 = vmatprep.subr.mxu0 0.0
      %749 = vmatpush1.xpose.msra.mxu0 %v744
      %750 = vmatprep.subr.mxu0 0.0
      %751 = vmatpush1.xpose.msra.mxu0 0.0
      %752 = vmatprep.subr.mxu0 0.0
      %753 = vmatpush1.xpose.msra.mxu0 0.0
      %754 = vmatprep.subr.mxu0 0.0
      %755 = vmatpush1.xpose.msra.mxu0 0.0
      %756 = vmatprep.subr.mxu0 0.0
      %757 = vmatpush1.xpose.msra.mxu0 0.0
      %758 = vmatprep.subr.mxu0 0.0
      %759 = vmatpush1.xpose.msra.mxu0 0.0
      %760 = vmatprep.subr.mxu0 0.0
      %761 = vmatpush1.xpose.msra.mxu0 0.0
      %762 = vmatprep.subr.mxu0 0.0
      %763 = vmatpush1.xpose.msra.mxu0 0.0
      %764 = vmatprep.subr.mxu0 0.0
      %765 = vmatpush1.xpose.msra.mxu0 0.0
      %766 = vmatprep.subr.mxu0 0.0
      %767 = vmatpush1.xpose.msra.mxu0 0.0
      %768 = vmatprep.subr.mxu0 0.0
      %769 = vmatpush1.xpose.msra.mxu0 0.0
      %770 = vmatprep.subr.mxu0 0.0
      %771 = vmatpush1.xpose.msra.mxu0 0.0
      %772 = vmatprep.subr.mxu0 0.0
      %773 = vmatpush1.xpose.msra.mxu0 0.0
      %774 = vmatprep.subr.mxu0 0.0
      %775 = vmatpush1.xpose.msra.mxu0 0.0
      %776 = vmatprep.subr.mxu0 0.0
      %777 = vmatpush1.xpose.msra.mxu0 0.0
      %778 = vmatprep.subr.mxu0 0.0
      %779 = vmatpush1.xpose.msra.mxu0 0.0
      %780 = vmatprep.subr.mxu0 0.0
      %781 = vmatpush1.xpose.msra.mxu0 0.0
      %782 = vmatprep.subr.mxu0 0.0
      %783 = vmatpush1.xpose.msra.mxu0 0.0
      %784 = vmatprep.subr.mxu0 0.0
      %785 = vmatpush1.xpose.msra.mxu0 0.0
      %786 = vmatprep.subr.mxu0 0.0
      %787 = vmatpush1.xpose.msra.mxu0 0.0
      %788 = vmatprep.subr.mxu0 0.0
      %789 = vmatpush1.xpose.msra.mxu0 0.0
      %790 = vmatprep.subr.mxu0 0.0
      %791 = vmatpush1.xpose.msra.mxu0 0.0
      %792 = vmatprep.subr.mxu0 0.0
      %793 = vmatpush1.xpose.msra.mxu0 0.0
      %794 = vmatprep.subr.mxu0 0.0
      %795 = vmatpush1.xpose.msra.mxu0 0.0
      %796 = vmatprep.subr.mxu0 0.0
      %797 = vmatpush1.xpose.msra.mxu0 0.0
      %798 = vmatprep.subr.mxu0 0.0
      %799 = vmatpush1.xpose.msra.mxu0 0.0
      %800 = vmatprep.subr.mxu0 0.0
      %801 = vmatpush1.xpose.msra.mxu0 0.0
      %802 = vmatprep.subr.mxu0 0.0
      %803 = vmatpush1.xpose.msra.mxu0 0.0
      %804 = vmatprep.subr.mxu0 0.0
      %805 = vmatpush1.xpose.msra.mxu0 0.0
      %806 = vmatprep.subr.mxu0 0.0
      %807 = vmatpush1.xpose.msra.mxu0 0.0
      %808 = vmatprep.subr.mxu0 0.0
      %809 = vmatpush1.xpose.msra.mxu0 0.0
      %810 = vmatprep.mubr.f32.mxu0 0.0
      %811 = vmatmul.mubr.f32.gmra.mrb[0].mxu0 %v738
      %v812 = vpop.f32.mrb[0].mxu0
      %v813 = vadd.f32 0.0, %v812
      %v814 = vpop.f32.mrb[0].mxu0
      %815 = vmatprep.mubr.f32.mxu0 0.0
      %816 = vmatmul.mubr.f32.gmra.mrb[0].mxu0 %v740
      %v817 = vpop.f32.mrb[0].mxu0
      %v818 = vadd.f32 0.0, %v817
      %v819 = vpop.f32.mrb[0].mxu0
      %820 = vdwg.mxu0
      %v821 = vmul.f32 %v813, 0.25
      %v822 = vmul.f32 %v818, 0.25
      %v823 = vsel %vm504, %v821, -inf
      %824 = vmax.xlane.f32.xlu0 %v823
      %v825 = vpop.xlane.xlu0 %824
      %v826 = vsel %vm504, %v822, -inf
      %827 = vmax.xlane.f32.xlu0 %v826
      %v828 = vpop.xlane.xlu0 %827
      %v829 = vsub.f32 %v821, %v825
      %v830 = vsub.f32 %v822, %v828
      %v831 = vmul.f32 %v829, 1.442695
      %v832 = vpow.pop %v831
      %v833 = vmul.f32 %v830, 1.442695
      %v834 = vpow.pop %v833
      %v835 = vsel %vm504, %v832, 0.0
      %836 = vadd.xlane.f32.xlu0 %v835
      %v837 = vpop.xlane.xlu0 %836
      %v838 = vsel %vm504, %v834, 0.0
      %839 = vadd.xlane.f32.xlu0 %v838
      %v840 = vpop.xlane.xlu0 %839
      %v841 = vrcp.pop %v837
      %v842 = vmul.f32 %v832, %v841
      %v843 = vrcp.pop %v840
      %v844 = vmul.f32 %v834, %v843
      %845 = vrot.lane.b32.xlu0 %v496, 48
      %v846 = vpop.permute.xlu0 %845
      %847 = vrot.lane.b32.xlu0 %v501, 48
      %v848 = vpop.permute.xlu0 %847
      %853 = vrot.lane.b32.xlu0 %v323, 112
      %v854 = vpop.permute.xlu0 %853
      %855 = vrot.lane.b32.xlu0 %v324, 112
      %v856 = vpop.permute.xlu0 %855
      %v860 = vsel %vm504, %v842, 0
      %v863 = vsel %vm504, %v844, 0
      %865 = vmatprep.subr.mxu0 0.0
      %866 = vmatpush1.msra.mxu0 %v846
      %867 = vmatprep.subr.mxu0 0.0
      %868 = vmatpush1.msra.mxu0 %v848
      %869 = vmatprep.subr.mxu0 0.0
      %870 = vmatpush1.msra.mxu0 0.0
      %871 = vmatprep.subr.mxu0 0.0
      %872 = vmatpush1.msra.mxu0 0.0
      %873 = vmatprep.subr.mxu0 0.0
      %874 = vmatpush1.msra.mxu0 0.0
      %875 = vmatprep.subr.mxu0 0.0
      %876 = vmatpush1.msra.mxu0 0.0
      %877 = vmatprep.subr.mxu0 0.0
      %878 = vmatpush1.msra.mxu0 0.0
      %879 = vmatprep.subr.mxu0 0.0
      %880 = vmatpush1.msra.mxu0 0.0
      %881 = vmatprep.subr.mxu0 0.0
      %882 = vmatpush1.msra.mxu0 0.0
      %883 = vmatprep.subr.mxu0 0.0
      %884 = vmatpush1.msra.mxu0 0.0
      %885 = vmatprep.subr.mxu0 0.0
      %886 = vmatpush1.msra.mxu0 0.0
      %887 = vmatprep.subr.mxu0 0.0
      %888 = vmatpush1.msra.mxu0 0.0
      %889 = vmatprep.subr.mxu0 0.0
      %890 = vmatpush1.msra.mxu0 0.0
      %891 = vmatprep.subr.mxu0 0.0
      %892 = vmatpush1.msra.mxu0 0.0
      %893 = vmatprep.subr.mxu0 0.0
      %894 = vmatpush1.msra.mxu0 0.0
      %895 = vmatprep.subr.mxu0 0.0
      %896 = vmatpush1.msra.mxu0 0.0
      %897 = vmatprep.subr.mxu0 0.0
      %898 = vmatpush1.msra.mxu0 0.0
      %899 = vmatprep.subr.mxu0 0.0
      %900 = vmatpush1.msra.mxu0 0.0
      %901 = vmatprep.subr.mxu0 0.0
      %902 = vmatpush1.msra.mxu0 0.0
      %903 = vmatprep.subr.mxu0 0.0
      %904 = vmatpush1.msra.mxu0 0.0
      %905 = vmatprep.subr.mxu0 0.0
      %906 = vmatpush1.msra.mxu0 0.0
      %907 = vmatprep.subr.mxu0 0.0
      %908 = vmatpush1.msra.mxu0 0.0
      %909 = vmatprep.subr.mxu0 0.0
      %910 = vmatpush1.msra.mxu0 0.0
      %911 = vmatprep.subr.mxu0 0.0
      %912 = vmatpush1.msra.mxu0 0.0
      %913 = vmatprep.subr.mxu0 0.0
      %914 = vmatpush1.msra.mxu0 0.0
      %915 = vmatprep.subr.mxu0 0.0
      %916 = vmatpush1.msra.mxu0 0.0
      %917 = vmatprep.subr.mxu0 0.0
      %918 = vmatpush1.msra.mxu0 0.0
      %919 = vmatprep.subr.mxu0 0.0
      %920 = vmatpush1.msra.mxu0 0.0
      %921 = vmatprep.subr.mxu0 0.0
      %922 = vmatpush1.msra.mxu0 0.0
      %923 = vmatprep.subr.mxu0 0.0
      %924 = vmatpush1.msra.mxu0 0.0
      %925 = vmatprep.subr.mxu0 0.0
      %926 = vmatpush1.msra.mxu0 0.0
      %927 = vmatprep.subr.mxu0 0.0
      %928 = vmatpush1.msra.mxu0 0.0
      %929 = vmatprep.mubr.f32.mxu0 0.0
      %930 = vmatmul.mubr.f32.gmra.mrb[0].mxu0 %v860
      %v931 = vpop.f32.mrb[0].mxu0
      %v932 = vadd.f32 %v854, %v931
      %v933 = vpop.f32.mrb[0].mxu0
      %934 = vmatprep.mubr.f32.mxu0 0.0
      %935 = vmatmul.mubr.f32.gmra.mrb[0].mxu0 %v863
      %v936 = vpop.f32.mrb[0].mxu0
      %v937 = vadd.f32 %v856, %v936
      %v938 = vpop.f32.mrb[0].mxu0
      %939 = vdwg.mxu0
      %v940 = vsel %vm504, %v932, 0.0
      %941 = vadd.xlane.f32.xlu0 %v940
      %v942 = vpop.xlane.xlu0 %941
      %v943 = vsel %vm504, %v937, 0.0
      %944 = vadd.xlane.f32.xlu0 %v943
      %v945 = vpop.xlane.xlu0 %944
      %v946 = vmul.f32 %v942, %v709
      %v947 = vmul.f32 %v945, %v709
      %v948 = vsub.f32 %v932, %v946
      %v949 = vsub.f32 %v937, %v947
      %v950 = vmul.f32 %v948, %v948
      %v951 = vmul.f32 %v949, %v949
      %v952 = vsel %vm504, %v950, 0.0
      %953 = vadd.xlane.f32.xlu0 %v952
      %v954 = vpop.xlane.xlu0 %953
      %v955 = vsel %vm504, %v951, 0.0
      %956 = vadd.xlane.f32.xlu0 %v955
      %v957 = vpop.xlane.xlu0 %956
      %v958 = vmul.f32 %v954, %v709
      %v959 = vmul.f32 %v957, %v709
      %v960 = vadd.f32 %v958, 1e-05
      %v961 = vadd.f32 %v959, 1e-05
      %v962 = vrsqrt.pop %v960
      %v963 = vrsqrt.pop %v961
      %v964 = vmul.f32 %v948, %v962
      %v965 = vmul.f32 %v949, %v963
      %966 = vrot.lane.b32.xlu0 %v407, 96
      %v967 = vpop.permute.xlu0 %966
      %968 = vrot.lane.b32.xlu0 %v412, 96
      %v969 = vpop.permute.xlu0 %968
      %970 = vrot.lane.b32.xlu0 %v496, 96
      %v971 = vpop.permute.xlu0 %970
      %972 = vrot.lane.b32.xlu0 %v501, 96
      %v973 = vpop.permute.xlu0 %972
      %v974 = vsel %vm504, %v967, 0
      %v976 = vsel %vm504, %v969, 0
      %v978 = vsel %vm504, %v971, 0
      %v980 = vsel %vm504, %v973, 0
      %982 = vmatprep.subr.mxu0 0.0
      %983 = vmatpush1.xpose.msra.mxu0 %v978
      %984 = vmatprep.subr.mxu0 0.0
      %985 = vmatpush1.xpose.msra.mxu0 %v980
      %986 = vmatprep.subr.mxu0 0.0
      %987 = vmatpush1.xpose.msra.mxu0 0.0
      %988 = vmatprep.subr.mxu0 0.0
      %989 = vmatpush1.xpose.msra.mxu0 0.0
      %990 = vmatprep.subr.mxu0 0.0
      %991 = vmatpush1.xpose.msra.mxu0 0.0
      %992 = vmatprep.subr.mxu0 0.0
      %993 = vmatpush1.xpose.msra.mxu0 0.0
      %994 = vmatprep.subr.mxu0 0.0
      %995 = vmatpush1.xpose.msra.mxu0 0.0
      %996 = vmatprep.subr.mxu0 0.0
      %997 = vmatpush1.xpose.msra.mxu0 0.0
      %998 = vmatprep.subr.mxu0 0.0
      %999 = vmatpush1.xpose.msra.mxu0 0.0
      %1000 = vmatprep.subr.mxu0 0.0
      %1001 = vmatpush1.xpose.msra.mxu0 0.0
      %1002 = vmatprep.subr.mxu0 0.0
      %1003 = vmatpush1.xpose.msra.mxu0 0.0
      %1004 = vmatprep.subr.mxu0 0.0
      %1005 = vmatpush1.xpose.msra.mxu0 0.0
      %1006 = vmatprep.subr.mxu0 0.0
      %1007 = vmatpush1.xpose.msra.mxu0 0.0
      %1008 = vmatprep.subr.mxu0 0.0
      %1009 = vmatpush1.xpose.msra.mxu0 0.0
      %1010 = vmatprep.subr.mxu0 0.0
      %1011 = vmatpush1.xpose.msra.mxu0 0.0
      %1012 = vmatprep.subr.mxu0 0.0
      %1013 = vmatpush1.xpose.msra.mxu0 0.0
      %1014 = vmatprep.subr.mxu0 0.0
      %1015 = vmatpush1.xpose.msra.mxu0 0.0
      %1016 = vmatprep.subr.mxu0 0.0
      %1017 = vmatpush1.xpose.msra.mxu0 0.0
      %1018 = vmatprep.subr.mxu0 0.0
      %1019 = vmatpush1.xpose.msra.mxu0 0.0
      %1020 = vmatprep.subr.mxu0 0.0
      %1021 = vmatpush1.xpose.msra.mxu0 0.0
      %1022 = vmatprep.subr.mxu0 0.0
      %1023 = vmatpush1.xpose.msra.mxu0 0.0
      %1024 = vmatprep.subr.mxu0 0.0
      %1025 = vmatpush1.xpose.msra.mxu0 0.0
      %1026 = vmatprep.subr.mxu0 0.0
      %1027 = vmatpush1.xpose.msra.mxu0 0.0
      %1028 = vmatprep.subr.mxu0 0.0
      %1029 = vmatpush1.xpose.msra.mxu0 0.0
      %1030 = vmatprep.subr.mxu0 0.0
      %1031 = vmatpush1.xpose.msra.mxu0 0.0
      %1032 = vmatprep.subr.mxu0 0.0
      %1033 = vmatpush1.xpose.msra.mxu0 0.0
      %1034 = vmatprep.subr.mxu0 0.0
      %1035 = vmatpush1.xpose.msra.mxu0 0.0
      %1036 = vmatprep.subr.mxu0 0.0
      %1037 = vmatpush1.xpose.msra.mxu0 0.0
      %1038 = vmatprep.subr.mxu0 0.0
      %1039 = vmatpush1.xpose.msra.mxu0 0.0
      %1040 = vmatprep.subr.mxu0 0.0
      %1041 = vmatpush1.xpose.msra.mxu0 0.0
      %1042 = vmatprep.subr.mxu0 0.0
      %1043 = vmatpush1.xpose.msra.mxu0 0.0
      %1044 = vmatprep.subr.mxu0 0.0
      %1045 = vmatpush1.xpose.msra.mxu0 0.0
      %1046 = vmatprep.mubr.f32.mxu0 0.0
      %1047 = vmatmul.mubr.f32.gmra.mrb[0].mxu0 %v974
      %v1048 = vpop.f32.mrb[0].mxu0
      %v1049 = vadd.f32 0.0, %v1048
      %v1050 = vpop.f32.mrb[0].mxu0
      %1051 = vmatprep.mubr.f32.mxu0 0.0
      %1052 = vmatmul.mubr.f32.gmra.mrb[0].mxu0 %v976
      %v1053 = vpop.f32.mrb[0].mxu0
      %v1054 = vadd.f32 0.0, %v1053
      %v1055 = vpop.f32.mrb[0].mxu0
      %1056 = vdwg.mxu0
      %v1057 = vmul.f32 %v1049, 0.25
      %v1058 = vmul.f32 %v1054, 0.25
      %v1059 = vsel %vm504, %v1057, -inf
      %1060 = vmax.xlane.f32.xlu0 %v1059
      %v1061 = vpop.xlane.xlu0 %1060
      %v1062 = vsel %vm504, %v1058, -inf
      %1063 = vmax.xlane.f32.xlu0 %v1062
      %v1064 = vpop.xlane.xlu0 %1063
      %v1065 = vsub.f32 %v1057, %v1061
      %v1066 = vsub.f32 %v1058, %v1064
      %v1067 = vmul.f32 %v1065, 1.442695
      %v1068 = vpow.pop %v1067
      %v1069 = vmul.f32 %v1066, 1.442695
      %v1070 = vpow.pop %v1069
      %v1071 = vsel %vm504, %v1068, 0.0
      %1072 = vadd.xlane.f32.xlu0 %v1071
      %v1073 = vpop.xlane.xlu0 %1072
      %v1074 = vsel %vm504, %v1070, 0.0
      %1075 = vadd.xlane.f32.xlu0 %v1074
      %v1076 = vpop.xlane.xlu0 %1075
      %v1077 = vrcp.pop %v1073
      %v1078 = vmul.f32 %v1068, %v1077
      %v1079 = vrcp.pop %v1076
      %v1080 = vmul.f32 %v1070, %v1079
      %1081 = vrot.lane.b32.xlu0 %v496, 32
      %v1082 = vpop.permute.xlu0 %1081
      %1083 = vrot.lane.b32.xlu0 %v501, 32
      %v1084 = vpop.permute.xlu0 %1083
      %1087 = vrot.lane.b32.xlu0 %v323, 96
      %v1088 = vpop.permute.xlu0 %1087
      %1089 = vrot.lane.b32.xlu0 %v324, 96
      %v1090 = vpop.permute.xlu0 %1089
      %v1094 = vsel %vm504, %v1078, 0
      %v1097 = vsel %vm504, %v1080, 0
      %1099 = vmatprep.subr.mxu0 0.0
      %1100 = vmatpush1.msra.mxu0 %v1082
      %1101 = vmatprep.subr.mxu0 0.0
      %1102 = vmatpush1.msra.mxu0 %v1084
      %1103 = vmatprep.subr.mxu0 0.0
      %1104 = vmatpush1.msra.mxu0 0.0
      %1105 = vmatprep.subr.mxu0 0.0
      %1106 = vmatpush1.msra.mxu0 0.0
      %1107 = vmatprep.subr.mxu0 0.0
      %1108 = vmatpush1.msra.mxu0 0.0
      %1109 = vmatprep.subr.mxu0 0.0
      %1110 = vmatpush1.msra.mxu0 0.0
      %1111 = vmatprep.subr.mxu0 0.0
      %1112 = vmatpush1.msra.mxu0 0.0
      %1113 = vmatprep.subr.mxu0 0.0
      %1114 = vmatpush1.msra.mxu0 0.0
      %1115 = vmatprep.subr.mxu0 0.0
      %1116 = vmatpush1.msra.mxu0 0.0
      %1117 = vmatprep.subr.mxu0 0.0
      %1118 = vmatpush1.msra.mxu0 0.0
      %1119 = vmatprep.subr.mxu0 0.0
      %1120 = vmatpush1.msra.mxu0 0.0
      %1121 = vmatprep.subr.mxu0 0.0
      %1122 = vmatpush1.msra.mxu0 0.0
      %1123 = vmatprep.subr.mxu0 0.0
      %1124 = vmatpush1.msra.mxu0 0.0
      %1125 = vmatprep.subr.mxu0 0.0
      %1126 = vmatpush1.msra.mxu0 0.0
      %1127 = vmatprep.subr.mxu0 0.0
      %1128 = vmatpush1.msra.mxu0 0.0
      %1129 = vmatprep.subr.mxu0 0.0
      %1130 = vmatpush1.msra.mxu0 0.0
      %1131 = vmatprep.subr.mxu0 0.0
      %1132 = vmatpush1.msra.mxu0 0.0
      %1133 = vmatprep.subr.mxu0 0.0
      %1134 = vmatpush1.msra.mxu0 0.0
      %1135 = vmatprep.subr.mxu0 0.0
      %1136 = vmatpush1.msra.mxu0 0.0
      %1137 = vmatprep.subr.mxu0 0.0
      %1138 = vmatpush1.msra.mxu0 0.0
      %1139 = vmatprep.subr.mxu0 0.0
      %1140 = vmatpush1.msra.mxu0 0.0
      %1141 = vmatprep.subr.mxu0 0.0
      %1142 = vmatpush1.msra.mxu0 0.0
      %1143 = vmatprep.subr.mxu0 0.0
      %1144 = vmatpush1.msra.mxu0 0.0
      %1145 = vmatprep.subr.mxu0 0.0
      %1146 = vmatpush1.msra.mxu0 0.0
      %1147 = vmatprep.subr.mxu0 0.0
      %1148 = vmatpush1.msra.mxu0 0.0
      %1149 = vmatprep.subr.mxu0 0.0
      %1150 = vmatpush1.msra.mxu0 0.0
      %1151 = vmatprep.subr.mxu0 0.0
      %1152 = vmatpush1.msra.mxu0 0.0
      %1153 = vmatprep.subr.mxu0 0.0
      %1154 = vmatpush1.msra.mxu0 0.0
      %1155 = vmatprep.subr.mxu0 0.0
      %1156 = vmatpush1.msra.mxu0 0.0
      %1157 = vmatprep.subr.mxu0 0.0
      %1158 = vmatpush1.msra.mxu0 0.0
      %1159 = vmatprep.subr.mxu0 0.0
      %1160 = vmatpush1.msra.mxu0 0.0
      %1161 = vmatprep.subr.mxu0 0.0
      %1162 = vmatpush1.msra.mxu0 0.0
      %1163 = vmatprep.mubr.f32.mxu0 0.0
      %1164 = vmatmul.mubr.f32.gmra.mrb[0].mxu0 %v1094
      %v1165 = vpop.f32.mrb[0].mxu0
      %v1166 = vadd.f32 %v1088, %v1165
      %v1167 = vpop.f32.mrb[0].mxu0
      %1168 = vmatprep.mubr.f32.mxu0 0.0
      %1169 = vmatmul.mubr.f32.gmra.mrb[0].mxu0 %v1097
      %v1170 = vpop.f32.mrb[0].mxu0
      %v1171 = vadd.f32 %v1090, %v1170
      %v1172 = vpop.f32.mrb[0].mxu0
      %1173 = vdwg.mxu0
      %v1174 = vsel %vm504, %v1166, 0.0
      %1175 = vadd.xlane.f32.xlu0 %v1174
      %v1176 = vpop.xlane.xlu0 %1175
      %v1177 = vsel %vm504, %v1171, 0.0
      %1178 = vadd.xlane.f32.xlu0 %v1177
      %v1179 = vpop.xlane.xlu0 %1178
      %v1180 = vmul.f32 %v1176, %v709
      %v1181 = vmul.f32 %v1179, %v709
      %v1182 = vsub.f32 %v1166, %v1180
      %v1183 = vsub.f32 %v1171, %v1181
      %v1184 = vmul.f32 %v1182, %v1182
      %v1185 = vmul.f32 %v1183, %v1183
      %v1186 = vsel %vm504, %v1184, 0.0
      %1187 = vadd.xlane.f32.xlu0 %v1186
      %v1188 = vpop.xlane.xlu0 %1187
      %v1189 = vsel %vm504, %v1185, 0.0
      %1190 = vadd.xlane.f32.xlu0 %v1189
      %v1191 = vpop.xlane.xlu0 %1190
      %v1192 = vmul.f32 %v1188, %v709
      %v1193 = vmul.f32 %v1191, %v709
      %v1194 = vadd.f32 %v1192, 1e-05
      %v1195 = vadd.f32 %v1193, 1e-05
      %v1196 = vrsqrt.pop %v1194
      %v1197 = vrsqrt.pop %v1195
      %v1198 = vmul.f32 %v1182, %v1196
      %v1199 = vmul.f32 %v1183, %v1197
      %1200 = vrot.lane.b32.xlu0 %v407, 80
      %v1201 = vpop.permute.xlu0 %1200
      %1202 = vrot.lane.b32.xlu0 %v412, 80
      %v1203 = vpop.permute.xlu0 %1202
      %1204 = vrot.lane.b32.xlu0 %v496, 80
      %v1205 = vpop.permute.xlu0 %1204
      %1206 = vrot.lane.b32.xlu0 %v501, 80
      %v1207 = vpop.permute.xlu0 %1206
      %v1208 = vsel %vm504, %v1201, 0
      %v1210 = vsel %vm504, %v1203, 0
      %v1212 = vsel %vm504, %v1205, 0
      %v1214 = vsel %vm504, %v1207, 0
      %1216 = vmatprep.subr.mxu0 0.0
      %1217 = vmatpush1.xpose.msra.mxu0 %v1212
      %1218 = vmatprep.subr.mxu0 0.0
      %1219 = vmatpush1.xpose.msra.mxu0 %v1214
      %1220 = vmatprep.subr.mxu0 0.0
      %1221 = vmatpush1.xpose.msra.mxu0 0.0
      %1222 = vmatprep.subr.mxu0 0.0
      %1223 = vmatpush1.xpose.msra.mxu0 0.0
      %1224 = vmatprep.subr.mxu0 0.0
      %1225 = vmatpush1.xpose.msra.mxu0 0.0
      %1226 = vmatprep.subr.mxu0 0.0
      %1227 = vmatpush1.xpose.msra.mxu0 0.0
      %1228 = vmatprep.subr.mxu0 0.0
      %1229 = vmatpush1.xpose.msra.mxu0 0.0
      %1230 = vmatprep.subr.mxu0 0.0
      %1231 = vmatpush1.xpose.msra.mxu0 0.0
      %1232 = vmatprep.subr.mxu0 0.0
      %1233 = vmatpush1.xpose.msra.mxu0 0.0
      %1234 = vmatprep.subr.mxu0 0.0
      %1235 = vmatpush1.xpose.msra.mxu0 0.0
      %1236 = vmatprep.subr.mxu0 0.0
      %1237 = vmatpush1.xpose.msra.mxu0 0.0
      %1238 = vmatprep.subr.mxu0 0.0
      %1239 = vmatpush1.xpose.msra.mxu0 0.0
      %1240 = vmatprep.subr.mxu0 0.0
      %1241 = vmatpush1.xpose.msra.mxu0 0.0
      %1242 = vmatprep.subr.mxu0 0.0
      %1243 = vmatpush1.xpose.msra.mxu0 0.0
      %1244 = vmatprep.subr.mxu0 0.0
      %1245 = vmatpush1.xpose.msra.mxu0 0.0
      %1246 = vmatprep.subr.mxu0 0.0
      %1247 = vmatpush1.xpose.msra.mxu0 0.0
      %1248 = vmatprep.subr.mxu0 0.0
      %1249 = vmatpush1.xpose.msra.mxu0 0.0
      %1250 = vmatprep.subr.mxu0 0.0
      %1251 = vmatpush1.xpose.msra.mxu0 0.0
      %1252 = vmatprep.subr.mxu0 0.0
      %1253 = vmatpush1.xpose.msra.mxu0 0.0
      %1254 = vmatprep.subr.mxu0 0.0
      %1255 = vmatpush1.xpose.msra.mxu0 0.0
      %1256 = vmatprep.subr.mxu0 0.0
      %1257 = vmatpush1.xpose.msra.mxu0 0.0
      %1258 = vmatprep.subr.mxu0 0.0
      %1259 = vmatpush1.xpose.msra.mxu0 0.0
      %1260 = vmatprep.subr.mxu0 0.0
      %1261 = vmatpush1.xpose.msra.mxu0 0.0
      %1262 = vmatprep.subr.mxu0 0.0
      %1263 = vmatpush1.xpose.msra.mxu0 0.0
      %1264 = vmatprep.subr.mxu0 0.0
      %1265 = vmatpush1.xpose.msra.mxu0 0.0
      %1266 = vmatprep.subr.mxu0 0.0
      %1267 = vmatpush1.xpose.msra.mxu0 0.0
      %1268 = vmatprep.subr.mxu0 0.0
      %1269 = vmatpush1.xpose.msra.mxu0 0.0
      %1270 = vmatprep.subr.mxu0 0.0
      %1271 = vmatpush1.xpose.msra.mxu0 0.0
      %1272 = vmatprep.subr.mxu0 0.0
      %1273 = vmatpush1.xpose.msra.mxu0 0.0
      %1274 = vmatprep.subr.mxu0 0.0
      %1275 = vmatpush1.xpose.msra.mxu0 0.0
      %1276 = vmatprep.subr.mxu0 0.0
      %1277 = vmatpush1.xpose.msra.mxu0 0.0
      %1278 = vmatprep.subr.mxu0 0.0
      %1279 = vmatpush1.xpose.msra.mxu0 0.0
      %1280 = vmatprep.mubr.f32.mxu0 0.0
      %1281 = vmatmul.mubr.f32.gmra.mrb[0].mxu0 %v1208
      %v1282 = vpop.f32.mrb[0].mxu0
      %v1283 = vadd.f32 0.0, %v1282
      %v1284 = vpop.f32.mrb[0].mxu0
      %1285 = vmatprep.mubr.f32.mxu0 0.0
      %1286 = vmatmul.mubr.f32.gmra.mrb[0].mxu0 %v1210
      %v1287 = vpop.f32.mrb[0].mxu0
      %v1288 = vadd.f32 0.0, %v1287
      %v1289 = vpop.f32.mrb[0].mxu0
      %1290 = vdwg.mxu0
      %v1291 = vmul.f32 %v1283, 0.25
      %v1292 = vmul.f32 %v1288, 0.25
      %v1293 = vsel %vm504, %v1291, -inf
      %1294 = vmax.xlane.f32.xlu0 %v1293
      %v1295 = vpop.xlane.xlu0 %1294
      %v1296 = vsel %vm504, %v1292, -inf
      %1297 = vmax.xlane.f32.xlu0 %v1296
      %v1298 = vpop.xlane.xlu0 %1297
      %v1299 = vsub.f32 %v1291, %v1295
      %v1300 = vsub.f32 %v1292, %v1298
      %v1301 = vmul.f32 %v1299, 1.442695
      %v1302 = vpow.pop %v1301
      %v1303 = vmul.f32 %v1300, 1.442695
      %v1304 = vpow.pop %v1303
      %v1305 = vsel %vm504, %v1302, 0.0
      %1306 = vadd.xlane.f32.xlu0 %v1305
      %v1307 = vpop.xlane.xlu0 %1306
      %v1308 = vsel %vm504, %v1304, 0.0
      %1309 = vadd.xlane.f32.xlu0 %v1308
      %v1310 = vpop.xlane.xlu0 %1309
      %v1311 = vrcp.pop %v1307
      %v1312 = vmul.f32 %v1302, %v1311
      %v1313 = vrcp.pop %v1310
      %v1314 = vmul.f32 %v1304, %v1313
      %1315 = vrot.lane.b32.xlu0 %v496, 16
      %v1316 = vpop.permute.xlu0 %1315
      %1317 = vrot.lane.b32.xlu0 %v501, 16
      %v1318 = vpop.permute.xlu0 %1317
      %1321 = vrot.lane.b32.xlu0 %v323, 80
      %v1322 = vpop.permute.xlu0 %1321
      %1323 = vrot.lane.b32.xlu0 %v324, 80
      %v1324 = vpop.permute.xlu0 %1323
      %v1328 = vsel %vm504, %v1312, 0
      %v1331 = vsel %vm504, %v1314, 0
      %1333 = vmatprep.subr.mxu0 0.0
      %1334 = vmatpush1.msra.mxu0 %v1316
      %1335 = vmatprep.subr.mxu0 0.0
      %1336 = vmatpush1.msra.mxu0 %v1318
      %1337 = vmatprep.subr.mxu0 0.0
      %1338 = vmatpush1.msra.mxu0 0.0
      %1339 = vmatprep.subr.mxu0 0.0
      %1340 = vmatpush1.msra.mxu0 0.0
      %1341 = vmatprep.subr.mxu0 0.0
      %1342 = vmatpush1.msra.mxu0 0.0
      %1343 = vmatprep.subr.mxu0 0.0
      %1344 = vmatpush1.msra.mxu0 0.0
      %1345 = vmatprep.subr.mxu0 0.0
      %1346 = vmatpush1.msra.mxu0 0.0
      %1347 = vmatprep.subr.mxu0 0.0
      %1348 = vmatpush1.msra.mxu0 0.0
      %1349 = vmatprep.subr.mxu0 0.0
      %1350 = vmatpush1.msra.mxu0 0.0
      %1351 = vmatprep.subr.mxu0 0.0
      %1352 = vmatpush1.msra.mxu0 0.0
      %1353 = vmatprep.subr.mxu0 0.0
      %1354 = vmatpush1.msra.mxu0 0.0
      %1355 = vmatprep.subr.mxu0 0.0
      %1356 = vmatpush1.msra.mxu0 0.0
      %1357 = vmatprep.subr.mxu0 0.0
      %1358 = vmatpush1.msra.mxu0 0.0
      %1359 = vmatprep.subr.mxu0 0.0
      %1360 = vmatpush1.msra.mxu0 0.0
      %1361 = vmatprep.subr.mxu0 0.0
      %1362 = vmatpush1.msra.mxu0 0.0
      %1363 = vmatprep.subr.mxu0 0.0
      %1364 = vmatpush1.msra.mxu0 0.0
      %1365 = vmatprep.subr.mxu0 0.0
      %1366 = vmatpush1.msra.mxu0 0.0
      %1367 = vmatprep.subr.mxu0 0.0
      %1368 = vmatpush1.msra.mxu0 0.0
      %1369 = vmatprep.subr.mxu0 0.0
      %1370 = vmatpush1.msra.mxu0 0.0
      %1371 = vmatprep.subr.mxu0 0.0
      %1372 = vmatpush1.msra.mxu0 0.0
      %1373 = vmatprep.subr.mxu0 0.0
      %1374 = vmatpush1.msra.mxu0 0.0
      %1375 = vmatprep.subr.mxu0 0.0
      %1376 = vmatpush1.msra.mxu0 0.0
      %1377 = vmatprep.subr.mxu0 0.0
      %1378 = vmatpush1.msra.mxu0 0.0
      %1379 = vmatprep.subr.mxu0 0.0
      %1380 = vmatpush1.msra.mxu0 0.0
      %1381 = vmatprep.subr.mxu0 0.0
      %1382 = vmatpush1.msra.mxu0 0.0
      %1383 = vmatprep.subr.mxu0 0.0
      %1384 = vmatpush1.msra.mxu0 0.0
      %1385 = vmatprep.subr.mxu0 0.0
      %1386 = vmatpush1.msra.mxu0 0.0
      %1387 = vmatprep.subr.mxu0 0.0
      %1388 = vmatpush1.msra.mxu0 0.0
      %1389 = vmatprep.subr.mxu0 0.0
      %1390 = vmatpush1.msra.mxu0 0.0
      %1391 = vmatprep.subr.mxu0 0.0
      %1392 = vmatpush1.msra.mxu0 0.0
      %1393 = vmatprep.subr.mxu0 0.0
      %1394 = vmatpush1.msra.mxu0 0.0
      %1395 = vmatprep.subr.mxu0 0.0
      %1396 = vmatpush1.msra.mxu0 0.0
      %1397 = vmatprep.mubr.f32.mxu0 0.0
      %1398 = vmatmul.mubr.f32.gmra.mrb[0].mxu0 %v1328
      %v1399 = vpop.f32.mrb[0].mxu0
      %v1400 = vadd.f32 %v1322, %v1399
      %v1401 = vpop.f32.mrb[0].mxu0
      %1402 = vmatprep.mubr.f32.mxu0 0.0
      %1403 = vmatmul.mubr.f32.gmra.mrb[0].mxu0 %v1331
      %v1404 = vpop.f32.mrb[0].mxu0
      %v1405 = vadd.f32 %v1324, %v1404
      %v1406 = vpop.f32.mrb[0].mxu0
      %1407 = vdwg.mxu0
      %v1408 = vsel %vm504, %v1400, 0.0
      %1409 = vadd.xlane.f32.xlu0 %v1408
      %v1410 = vpop.xlane.xlu0 %1409
      %v1411 = vsel %vm504, %v1405, 0.0
      %1412 = vadd.xlane.f32.xlu0 %v1411
      %v1413 = vpop.xlane.xlu0 %1412
      %v1414 = vmul.f32 %v1410, %v709
      %v1415 = vmul.f32 %v1413, %v709
      %v1416 = vsub.f32 %v1400, %v1414
      %v1417 = vsub.f32 %v1405, %v1415
      %v1418 = vmul.f32 %v1416, %v1416
      %v1419 = vmul.f32 %v1417, %v1417
      %v1420 = vsel %vm504, %v1418, 0.0
      %1421 = vadd.xlane.f32.xlu0 %v1420
      %v1422 = vpop.xlane.xlu0 %1421
      %v1423 = vsel %vm504, %v1419, 0.0
      %1424 = vadd.xlane.f32.xlu0 %v1423
      %v1425 = vpop.xlane.xlu0 %1424
      %v1426 = vmul.f32 %v1422, %v709
      %v1427 = vmul.f32 %v1425, %v709
      %v1428 = vadd.f32 %v1426, 1e-05
      %v1429 = vadd.f32 %v1427, 1e-05
      %v1430 = vrsqrt.pop %v1428
      %v1431 = vrsqrt.pop %v1429
      %v1432 = vmul.f32 %v1416, %v1430
      %v1433 = vmul.f32 %v1417, %v1431
      %1436 = vrot.lane.b32.xlu0 %v964, 16
      %v1437 = vpop.permute.xlu0 %1436
      %1438 = vrot.lane.b32.xlu0 %v965, 16
      %v1439 = vpop.permute.xlu0 %1438
      %1444 = vrot.lane.b32.xlu0 %v1198, 32
      %v1445 = vpop.permute.xlu0 %1444
      %1446 = vrot.lane.b32.xlu0 %v1199, 32
      %v1447 = vpop.permute.xlu0 %1446
      %1452 = vrot.lane.b32.xlu0 %v1432, 48
      %v1453 = vpop.permute.xlu0 %1452
      %1454 = vrot.lane.b32.xlu0 %v1433, 48
      %v1455 = vpop.permute.xlu0 %1454
      %v1458 = vsel %vm504, %v728, %v1437
      %v1459 = vsel %vm504, %v729, %v1439
      %vm1460 = vcmask 261120
      %v1461 = vsel %vm1460, %v1458, %v1445
      %v1462 = vsel %vm1460, %v1459, %v1447
      %vm1463 = vcmask 392192
      %v1464 = vsel %vm1463, %v1461, %v1453
      %v1465 = vsel %vm1463, %v1462, %v1455
      %v1466 = vld [vmem:[%s5] sm:$0x1]
      %v1468 = vlaneseq
      %v1469 = vshrl.u32 %v1468, 7
      %v1470 = vsub.s32 0, %v1469
      %v1471 = vrot.slane %v1466, %v1470
      %v1473 = vmul.f32 %v1464, %v1471
      %v1474 = vmul.f32 %v1465, %v1471
      %v1475 = vld [vmem:[%s6] sm:$0x1]
      %v1477 = vlaneseq
      %v1478 = vshrl.u32 %v1477, 7
      %v1479 = vsub.s32 0, %v1478
      %v1480 = vrot.slane %v1475, %v1479
      %v1482 = vadd.f32 %v1473, %v1480
      %v1483 = vadd.f32 %v1474, %v1480
      %1484 = vst.msk [vmem:[%s318] sm:$0xff] %vm333, %v1482
      %1485 = vst.msk [vmem:[%s318 + $0x8] sm:$0xff] %vm333, %v1483
      %p1486 = scmp.lt.s32.totalorder %s18, 1
      %s1487 = scalar_select %p1486, %s18, 1
      %s1488 = smul.addr %s1487, 2
      %s1489 = smul.addr %s1488, 8
      %s1490 = scalar_lea.vmem %s7, %s1489
      // Predicated region
      $region49: #{my_attention.1} parent=47 // pred_check
        %p1491 = pneg %p198
      $region50: #{my_attention.1} parent=47 // pred_check_branch
        %1493 = sbr.rel (%p1491) target = $region52
      $region51: #{my_attention.1} parent=47 // pred_region
        _
      $region52: #{my_attention.1} parent=47 // pred_fallthru
        _
    $region48: #{my_attention.1} parent=5 // pred_fallthru
      _
    %p1494 = scmp.le.s32.totalorder 2, %s13
    // Predicated region
    $region53: #{my_attention.1} parent=5 // pred_check
      %p1495 = pneg %p1494
    $region54: #{my_attention.1} parent=5 // pred_check_branch
      %1497 = sbr.rel (%p1495) target = $region56
    $region55: #{my_attention.1} parent=5 // pred_region
      %s1498 = ssub.s32 %s13, 2
      // Predicated region
      $region57: #{my_attention.1} parent=55 // pred_check
        %p1499 = pneg %p204
      $region58: #{my_attention.1} parent=55 // pred_check_branch
        %1501 = sbr.rel (%p1499) target = $region60
      $region59: #{my_attention.1} parent=55 // pred_region
        %p1502 = scmp.lt.s32.totalorder %s19, 1
        %s1503 = scalar_select %p1502, %s19, 1
        %s1504 = smul.addr %s1503, 2
        %s1505 = smul.addr %s1504, 8
        %s1506 = scalar_lea.vmem %s7, %s1505
      $region60: #{my_attention.1} parent=55 // pred_fallthru
        _
    $region56: #{my_attention.1} parent=5 // pred_fallthru
      _
  $region6: #{my_attention.1} parent=0 // loop_footer
    %s17 = sadd.s32 1, %s13
  $region7: #{my_attention.1} parent=0 // loop_footer_branch
    %12 = sbr.rel target = $region3
  $region8: #{my_attention.1} parent=0 // loop_exit
    _

</llo_original>
